<compile_context>
chip_gen: v7x
topology: tpu7x:2x2x1
jax: 0.10.0
libtpu: 0.0.40
codegen_flags: <defaults>
</compile_context>

<pallas_src>
import functools

import jax
import jax.numpy as jnp
from jax.experimental import pallas as pl
from jax.experimental.pallas import tpu as pltpu


_LANES = 128
_SUBLANES = 8
_NBUF = 2  # BlockSpec double-buffering depth per pipelined input


def _cdiv(a, b):
    return -(-a // b)


def _round_up(x, m):
    return _cdiv(x, m) * m


def _vmem_budget_bytes():
    """(pipeline budget for the input buffers, vmem_limit_bytes), per generation."""
    try:
        kind = jax.devices()[0].device_kind.lower()
    except Exception:  # pragma: no cover - defensive
        kind = ""
    if ("v5" in kind) or ("v6" in kind):
        # v5e / v6e: 128 MiB physical VMEM -> large tiles amortize the ~0.35us
        # per-grid-step overhead well below 5% of the HBM roofline.
        return 48 * 1024 * 1024, 64 * 1024 * 1024
    # v7x (64 MiB physical per TC) and unknown chips: stay conservative.
    return 36 * 1024 * 1024, 48 * 1024 * 1024


def _choose_tiles(n128, feat, itemsize, budget):
    """Pick (t_rows, f_tile).  One grid step streams a (t_rows*128, f_tile)
    block of each input; the budget covers the pipelined input buffers
    (2 inputs x _NBUF buffers), including the 128-lane padding of F in VMEM."""
    g_slabs = n128 // _LANES                       # total 128-row slabs
    f_pad = _round_up(feat, _LANES)                # lane-padded feature width
    per_slab = 2 * _NBUF * _LANES * f_pad * itemsize
    slabs = budget // per_slab                     # slabs per step within budget

    if g_slabs <= slabs:
        return g_slabs, feat                       # whole problem in one step
    if slabs >= _SUBLANES:
        # Multi row-tile, full F per step.  t_rows multiple of 8 keeps the
        # lane-dense output block shape legal.
        return (slabs // _SUBLANES) * _SUBLANES, feat

    # Very large in_features (or tiny forced budget): split the feature axis
    # over an "arbitrary" grid axis with an f32 accumulator.
    t_rows = _SUBLANES if g_slabs >= _SUBLANES else g_slabs
    per_f128 = 2 * _NBUF * t_rows * _LANES * _LANES * itemsize
    f_tile = max(_LANES, (budget // max(per_f128, 1)) * _LANES)
    if f_tile >= feat:
        f_tile = feat
    return t_rows, f_tile


def _filt_linear_kernel(xr_ref, xi_ref, wr_ref, wi_ref, or_ref, oi_ref,
                        acc_r_ref, acc_i_ref, *, feat):
    k = pl.program_id(1)

    @pl.when(k == 0)
    def _init():
        acc_r_ref[...] = jnp.zeros_like(acc_r_ref)
        acc_i_ref[...] = jnp.zeros_like(acc_i_ref)

    xr = xr_ref[...]                    # (row_block, f_tile), storage dtype
    xi = xi_ref[...]
    wr = wr_ref[...]                    # (1, f_tile)
    wi = wi_ref[...]

    f_tile = xr.shape[-1]
    if feat % f_tile != 0:
        # The last feature tile reads past F: zero both operands on the
        # out-of-bounds columns so unspecified values can't contaminate the
        # contraction (only emitted when F isn't a multiple of f_tile).
        base = k * f_tile
        keep = (jax.lax.broadcasted_iota(jnp.int32, xr.shape, 1) + base) < feat
        xr = jnp.where(keep, xr, jnp.zeros((), xr.dtype))
        xi = jnp.where(keep, xi, jnp.zeros((), xi.dtype))
        wkeep = (jax.lax.broadcasted_iota(jnp.int32, wr.shape, 1) + base) < feat
        wr = jnp.where(wkeep, wr, jnp.zeros((), wr.dtype))
        wi = jnp.where(wkeep, wi, jnp.zeros((), wi.dtype))

    # F-contraction on the MXU (rhs-transposed, Q.K^T-style dims), f32 accumulate.
    dims = (((1,), (1,)), ((), ()))
    pr = jax.lax.dot_general(xr, wr, dims,
                             precision=jax.lax.Precision.HIGHEST,
                             preferred_element_type=jnp.float32)   # (row_block, 1)
    pi = jax.lax.dot_general(xi, wi, dims,
                             precision=jax.lax.Precision.HIGHEST,
                             preferred_element_type=jnp.float32)
    # Relayout the narrow result to the lane-dense accumulator tile.
    acc_r_ref[...] += pr.reshape(acc_r_ref.shape)
    acc_i_ref[...] += pi.reshape(acc_i_ref.shape)

    @pl.when(k == pl.num_programs(1) - 1)
    def _finalize():
        or_ref[...] = acc_r_ref[...].astype(or_ref.dtype)
        oi_ref[...] = acc_i_ref[...].astype(oi_ref.dtype)


def filt_linear(x_real, x_imag, w_real, w_imag, *, pipeline_budget_bytes=None):
    """Pallas equivalent of FiltLinear.forward (bias=False).

    x_real, x_imag: (..., F)
    w_real, w_imag: (1, F)   (PyTorch nn.Linear weight layout: (out=1, in=F))
    returns: (out_real, out_imag), each of shape (..., 1)
    """
    assert x_real.shape == x_imag.shape
    lead, feat = x_real.shape[:-1], x_real.shape[-1]
    dtype = x_real.dtype

    # Tiny weights: keep them in the activation dtype so the MXU consumes the
    # storage dtype directly (bf16-native on all three generations).
    w_real = jnp.asarray(w_real, dtype).reshape(1, feat)
    w_imag = jnp.asarray(w_imag, dtype).reshape(1, feat)

    xr = x_real.reshape(-1, feat)
    xi = x_imag.reshape(-1, feat)
    n_rows = xr.shape[0]

    # Lane-align the rows.  This copies only when n_rows % 128 != 0 and adds at
    # most 127 rows (the old pad-to-tile_rows full-copy path is gone).
    n128 = _round_up(max(n_rows, 1), _LANES)
    if n128 != n_rows:
        xr = jnp.pad(xr, ((0, n128 - n_rows), (0, 0)))
        xi = jnp.pad(xi, ((0, n128 - n_rows), (0, 0)))

    budget, vmem_limit = _vmem_budget_bytes()
    if pipeline_budget_bytes is not None:
        budget = pipeline_budget_bytes

    itemsize = jnp.dtype(dtype).itemsize
    t_rows, f_tile = _choose_tiles(n128, feat, itemsize, budget)
    row_block = t_rows * _LANES
    num_row_tiles = _cdiv(n128, row_block)
    num_f_tiles = _cdiv(feat, f_tile)
    out_rows = num_row_tiles * t_rows

    kernel = functools.partial(_filt_linear_kernel, feat=feat)

    # TODO(synk): on v7x, sweep pipeline_mode=pl.Buffered(3) on the two input
    # BlockSpecs (extra buffer hides DMA-issue gaps) once supported everywhere.
    out_r, out_i = pl.pallas_call(
        kernel,
        out_shape=(
            jax.ShapeDtypeStruct((out_rows, _LANES), dtype),
            jax.ShapeDtypeStruct((out_rows, _LANES), dtype),
        ),
        grid=(num_row_tiles, num_f_tiles),
        in_specs=[
            pl.BlockSpec((row_block, f_tile), lambda i, k: (i, k)),
            pl.BlockSpec((row_block, f_tile), lambda i, k: (i, k)),
            pl.BlockSpec((1, f_tile), lambda i, k: (0, k)),
            pl.BlockSpec((1, f_tile), lambda i, k: (0, k)),
        ],
        out_specs=(
            pl.BlockSpec((t_rows, _LANES), lambda i, k: (i, 0)),
            pl.BlockSpec((t_rows, _LANES), lambda i, k: (i, 0)),
        ),
        scratch_shapes=[
            pltpu.VMEM((t_rows, _LANES), jnp.float32),
            pltpu.VMEM((t_rows, _LANES), jnp.float32),
        ],
        compiler_params=pltpu.CompilerParams(
            dimension_semantics=("parallel", "arbitrary"),
            vmem_limit_bytes=vmem_limit,
        ),
    )(xr, xi, w_real, w_imag)

    out_r = out_r.reshape(-1)[:n_rows].reshape(*lead, 1)
    out_i = out_i.reshape(-1)[:n_rows].reshape(*lead, 1)
    return out_r, out_i


if __name__ == "__main__":
    key = jax.random.PRNGKey(0)
    k0, k1, k2, k3 = jax.random.split(key, 4)

    def ref(x, w):
        return jnp.sum(x.astype(jnp.float32) * w.astype(jnp.float32)[0],
                       axis=-1, keepdims=True).astype(x.dtype)

    # 1) Small module-shaped case (batch=2, seq=8, in_features=32): single-step path.
    B, S, F = 2, 8, 32
    xr = jax.random.normal(k0, (B, S, F), jnp.float32)
    xi = jax.random.normal(k1, (B, S, F), jnp.float32)
    bound = 1.0 / (F ** 0.5)
    wr = jax.random.uniform(k2, (1, F), jnp.float32, -bound, bound)
    wi = jax.random.uniform(k3, (1, F), jnp.float32, -bound, bound)
    or_, oi_ = jax.block_until_ready(filt_linear(xr, xi, wr, wi))
    assert or_.shape == (B, S, 1) and oi_.shape == (B, S, 1)
    assert jnp.allclose(or_, ref(xr, wr), atol=1e-3, rtol=1e-3)
    assert jnp.allclose(oi_, ref(xi, wi), atol=1e-3, rtol=1e-3)

    # 2) Multi-row-tile path (partial last row tile + row lane-padding), forced
    #    by a small pipeline budget.
    B2, S2, F2 = 3, 700, 48
    xr2 = jax.random.normal(k0, (B2, S2, F2), jnp.float32)
    xi2 = jax.random.normal(k1, (B2, S2, F2), jnp.float32)
    wr2 = jax.random.uniform(k2, (1, F2), jnp.float32, -0.15, 0.15)
    wi2 = jax.random.uniform(k3, (1, F2), jnp.float32, -0.15, 0.15)
    or2, oi2 = jax.block_until_ready(
        filt_linear(xr2, xi2, wr2, wi2, pipeline_budget_bytes=2 * 1024 * 1024))
    assert or2.shape == (B2, S2, 1) and oi2.shape == (B2, S2, 1)
    assert jnp.allclose(or2, ref(xr2, wr2), atol=1e-3, rtol=1e-3)
    assert jnp.allclose(oi2, ref(xi2, wi2), atol=1e-3, rtol=1e-3)

    # 3) Large-F path: feature axis split over the "arbitrary" grid axis with f32
    #    accumulation and in-kernel masking of the ragged last feature tile.
    B3, S3, F3 = 2, 96, 520
    xr3 = jax.random.normal(k0, (B3, S3, F3), jnp.float32)
    xi3 = jax.random.normal(k1, (B3, S3, F3), jnp.float32)
    wr3 = jax.random.uniform(k2, (1, F3), jnp.float32, -0.05, 0.05)
    wi3 = jax.random.uniform(k3, (1, F3), jnp.float32, -0.05, 0.05)
    or3, oi3 = jax.block_until_ready(
        filt_linear(xr3, xi3, wr3, wi3, pipeline_budget_bytes=256 * 1024))
    assert or3.shape == (B3, S3, 1) and oi3.shape == (B3, S3, 1)
    assert jnp.allclose(or3, ref(xr3, wr3), atol=1e-3, rtol=1e-3)
    assert jnp.allclose(oi3, ref(xi3, wi3), atol=1e-3, rtol=1e-3)

    print("KERNEL_OK")
</pallas_src>

<mosaic_0001>
module attributes {stable_mosaic.version = 11 : i64} {
  func.func @_filt_linear_kernel(%arg0: i32, %arg1: i32, %arg2: memref<128x32xf32, #tpu.memory_space<vmem>>, %arg3: memref<128x32xf32, #tpu.memory_space<vmem>>, %arg4: memref<1x32xf32, #tpu.memory_space<vmem>>, %arg5: memref<1x32xf32, #tpu.memory_space<vmem>>, %arg6: memref<1x128xf32, #tpu.memory_space<vmem>>, %arg7: memref<1x128xf32, #tpu.memory_space<vmem>>, %arg8: memref<1x128xf32, #tpu.memory_space<vmem>>, %arg9: memref<1x128xf32, #tpu.memory_space<vmem>>) attributes {dimension_semantics = [#tpu.dimension_semantics<parallel>, #tpu.dimension_semantics<arbitrary>], iteration_bounds = array<i64: 1, 1>, scalar_prefetch = 0 : i64, scratch_operands = 2 : i64, tpu.core_type = #tpu.core_type<tc>, window_params = [{transform_indices = @transform_0, window_bounds = array<i64: 128, 32>}, {transform_indices = @transform_1, window_bounds = array<i64: 128, 32>}, {transform_indices = @transform_2, window_bounds = array<i64: 1, 32>}, {transform_indices = @transform_3, window_bounds = array<i64: 1, 32>}, {transform_indices = @transform_4, window_bounds = array<i64: 1, 128>}, {transform_indices = @transform_5, window_bounds = array<i64: 1, 128>}]} {
    %c0_i32 = arith.constant 0 : i32
    %0 = arith.cmpi eq, %arg1, %c0_i32 : i32
    %1 = arith.extui %0 : i1 to i32
    %c0_i32_0 = arith.constant 0 : i32
    %2 = arith.cmpi ne, %1, %c0_i32_0 : i32
    scf.if %2 {
      %cst_19 = arith.constant 0.000000e+00 : f32
      %20 = vector.broadcast %cst_19 : f32 to vector<1x128xf32>
      %c0_20 = arith.constant 0 : index
      %c0_21 = arith.constant 0 : index
      %21 = vector.load %arg8[%c0_20, %c0_21] : memref<1x128xf32, #tpu.memory_space<vmem>>, vector<1x128xf32>
      tpu.vector_store %arg8[%c0_20, %c0_21], %20 {strides = array<i32>} : memref<1x128xf32, #tpu.memory_space<vmem>>, vector<1x128xf32>,
      %cst_22 = arith.constant 0.000000e+00 : f32
      %22 = vector.broadcast %cst_22 : f32 to vector<1x128xf32>
      %c0_23 = arith.constant 0 : index
      %c0_24 = arith.constant 0 : index
      %23 = vector.load %arg9[%c0_23, %c0_24] : memref<1x128xf32, #tpu.memory_space<vmem>>, vector<1x128xf32>
      tpu.vector_store %arg9[%c0_23, %c0_24], %22 {strides = array<i32>} : memref<1x128xf32, #tpu.memory_space<vmem>>, vector<1x128xf32>,
    } else {
    }
    %c0 = arith.constant 0 : index
    %c0_1 = arith.constant 0 : index
    %3 = vector.load %arg2[%c0, %c0_1] : memref<128x32xf32, #tpu.memory_space<vmem>>, vector<128x32xf32>
    %c0_2 = arith.constant 0 : index
    %c0_3 = arith.constant 0 : index
    %4 = vector.load %arg3[%c0_2, %c0_3] : memref<128x32xf32, #tpu.memory_space<vmem>>, vector<128x32xf32>
    %c0_4 = arith.constant 0 : index
    %c0_5 = arith.constant 0 : index
    %5 = vector.load %arg4[%c0_4, %c0_5] : memref<1x32xf32, #tpu.memory_space<vmem>>, vector<1x32xf32>
    %c0_6 = arith.constant 0 : index
    %c0_7 = arith.constant 0 : index
    %6 = vector.load %arg5[%c0_6, %c0_7] : memref<1x32xf32, #tpu.memory_space<vmem>>, vector<1x32xf32>
    %cst = arith.constant dense<0.000000e+00> : vector<128x1xf32>
    %7 = tpu.matmul %3, %5, %cst {dimension_numbers = #tpu.dot_dimension_numbers<[1], [1], [0], [0], [0, 0, 1, 0], [], []>, precision = #tpu.contract_precision<fp32>} : vector<128x32xf32>, vector<1x32xf32>, vector<128x1xf32> -> vector<128x1xf32>
    %cst_8 = arith.constant dense<0.000000e+00> : vector<128x1xf32>
    %8 = tpu.matmul %4, %6, %cst_8 {dimension_numbers = #tpu.dot_dimension_numbers<[1], [1], [0], [0], [0, 0, 1, 0], [], []>, precision = #tpu.contract_precision<fp32>} : vector<128x32xf32>, vector<1x32xf32>, vector<128x1xf32> -> vector<128x1xf32>
    %c0_9 = arith.constant 0 : index
    %c0_10 = arith.constant 0 : index
    %9 = vector.load %arg8[%c0_9, %c0_10] : memref<1x128xf32, #tpu.memory_space<vmem>>, vector<1x128xf32>
    %10 = vector.shape_cast %7 : vector<128x1xf32> to vector<1x128xf32>
    %11 = arith.addf %9, %10 : vector<1x128xf32>
    %c0_11 = arith.constant 0 : index
    %c0_12 = arith.constant 0 : index
    %12 = vector.load %arg8[%c0_11, %c0_12] : memref<1x128xf32, #tpu.memory_space<vmem>>, vector<1x128xf32>
    tpu.vector_store %arg8[%c0_11, %c0_12], %11 {strides = array<i32>} : memref<1x128xf32, #tpu.memory_space<vmem>>, vector<1x128xf32>,
    %c0_13 = arith.constant 0 : index
    %c0_14 = arith.constant 0 : index
    %13 = vector.load %arg9[%c0_13, %c0_14] : memref<1x128xf32, #tpu.memory_space<vmem>>, vector<1x128xf32>
    %14 = vector.shape_cast %8 : vector<128x1xf32> to vector<1x128xf32>
    %15 = arith.addf %13, %14 : vector<1x128xf32>
    %c0_15 = arith.constant 0 : index
    %c0_16 = arith.constant 0 : index
    %16 = vector.load %arg9[%c0_15, %c0_16] : memref<1x128xf32, #tpu.memory_space<vmem>>, vector<1x128xf32>
    tpu.vector_store %arg9[%c0_15, %c0_16], %15 {strides = array<i32>} : memref<1x128xf32, #tpu.memory_space<vmem>>, vector<1x128xf32>,
    %c0_i32_17 = arith.constant 0 : i32
    %17 = arith.cmpi eq, %arg1, %c0_i32_17 : i32
    %18 = arith.extui %17 : i1 to i32
    %c0_i32_18 = arith.constant 0 : i32
    %19 = arith.cmpi ne, %18, %c0_i32_18 : i32
    scf.if %19 {
      %c0_19 = arith.constant 0 : index
      %c0_20 = arith.constant 0 : index
      %20 = vector.load %arg8[%c0_19, %c0_20] : memref<1x128xf32, #tpu.memory_space<vmem>>, vector<1x128xf32>
      %c0_21 = arith.constant 0 : index
      %c0_22 = arith.constant 0 : index
      %21 = vector.load %arg6[%c0_21, %c0_22] : memref<1x128xf32, #tpu.memory_space<vmem>>, vector<1x128xf32>
      tpu.vector_store %arg6[%c0_21, %c0_22], %20 {strides = array<i32>} : memref<1x128xf32, #tpu.memory_space<vmem>>, vector<1x128xf32>,
      %c0_23 = arith.constant 0 : index
      %c0_24 = arith.constant 0 : index
      %22 = vector.load %arg9[%c0_23, %c0_24] : memref<1x128xf32, #tpu.memory_space<vmem>>, vector<1x128xf32>
      %c0_25 = arith.constant 0 : index
      %c0_26 = arith.constant 0 : index
      %23 = vector.load %arg7[%c0_25, %c0_26] : memref<1x128xf32, #tpu.memory_space<vmem>>, vector<1x128xf32>
      tpu.vector_store %arg7[%c0_25, %c0_26], %22 {strides = array<i32>} : memref<1x128xf32, #tpu.memory_space<vmem>>, vector<1x128xf32>,
    } else {
    }
    return
  }
  func.func @transform_0(%arg0: i32, %arg1: i32) -> (i32, i32) {
    %c0_i32 = arith.constant 0 : i32
    return %arg0, %arg1 : i32, i32
  }
  func.func @transform_1(%arg0: i32, %arg1: i32) -> (i32, i32) {
    %c0_i32 = arith.constant 0 : i32
    return %arg0, %arg1 : i32, i32
  }
  func.func @transform_2(%arg0: i32, %arg1: i32) -> (i32, i32) {
    %c0_i32 = arith.constant 0 : i32
    %c0_i32_0 = arith.constant 0 : i32
    return %c0_i32, %arg1 : i32, i32
  }
  func.func @transform_3(%arg0: i32, %arg1: i32) -> (i32, i32) {
    %c0_i32 = arith.constant 0 : i32
    %c0_i32_0 = arith.constant 0 : i32
    return %c0_i32, %arg1 : i32, i32
  }
  func.func @transform_4(%arg0: i32, %arg1: i32) -> (i32, i32) {
    %c0_i32 = arith.constant 0 : i32
    %c0_i32_0 = arith.constant 0 : i32
    return %arg0, %c0_i32 : i32, i32
  }
  func.func @transform_5(%arg0: i32, %arg1: i32) -> (i32, i32) {
    %c0_i32 = arith.constant 0 : i32
    %c0_i32_0 = arith.constant 0 : i32
    return %arg0, %c0_i32 : i32, i32
  }
}

</mosaic_0001>

<llo_original>
// kernel: tpu_custom_call.1
$region0: #{tpu_custom_call.1}
  #allocation0 [shape = 'u32[]', space=smem, size = 0x4, offset = 0x4, fixed_abs, tag = 'smem constant byte address 0x4 - core index']
  #allocation1 [shape = 'u32[144,128]{1,0:T(1,128)}', space=vmem, size = 0x12000, scoped, tag = 'internal scratch']
  #allocation2 [shape = 'f32[1,128]{1,0:T(1,128)}', space=vmem, size = 0x200, scoped, tag = 'scratch operand']
  #allocation3 [shape = 'f32[1,128]{1,0:T(1,128)}', space=vmem, size = 0x200, scoped, tag = 'scratch operand']
  %s0 = inlined_call_operand.vmem [shape: f32[128,32], index: 0, kind: input, shape index: {}]
  %s1 = inlined_call_operand.vmem [shape: f32[128,32], index: 1, kind: input, shape index: {}]
  %s2 = inlined_call_operand.vmem [shape: f32[1,32], index: 2, kind: input, shape index: {}]
  %s3 = inlined_call_operand.vmem [shape: f32[1,32], index: 3, kind: input, shape index: {}]
  %s4 = inlined_call_operand.hbm [shape: f32[1,128], index: 4, kind: output, shape index: {0}]
  %s5 = inlined_call_operand.hbm [shape: f32[1,128], index: 5, kind: output, shape index: {1}]
  %6 = xla_tuple %s4, %s5
  %s7 = sld [smem:[#allocation0]]
  $region42: #{tpu_custom_call.1} parent=0
    _
  %s9 = ssub.s32 1, %s7
  %s10 = scalar_select 0, %s9, %s7
  $region1: #{tpu_custom_call.1} parent=0
    #allocation4 [shape = 'u8[512]{0}', space=vmem, size = 0x400, scoped, tag = 'output window, operand 0, single buffered']
    #allocation5 [shape = 's32[1]{0}', space=sflag, size = 0x4, scoped, tag = 'scoped memory for tpu_custom_call.1']
    #allocation6 [shape = 'u8[512]{0}', space=vmem, size = 0x400, scoped, tag = 'output window, operand 1, single buffered']
    #allocation7 [shape = 's32[1]{0}', space=sflag, size = 0x4, scoped, tag = 'scoped memory for tpu_custom_call.1']
    %11 = vsyncpa [#allocation5], 0
    %12 = vsyncpa [#allocation7], 0
    // Predicated region
    $region2: #{tpu_custom_call.1} parent=1 // pred_check
      _
    $region3: #{tpu_custom_call.1} parent=1 // pred_check_branch
      %14 = sbr.rel (0) target = $region5
    $region4: #{tpu_custom_call.1} parent=1 // pred_region
      _
    $region5: #{tpu_custom_call.1} parent=1 // pred_fallthru
      _
    // Predicated region
    $region6: #{tpu_custom_call.1} parent=1 // pred_check
      _
    $region7: #{tpu_custom_call.1} parent=1 // pred_check_branch
      %16 = sbr.rel (0) target = $region9
    $region8: #{tpu_custom_call.1} parent=1 // pred_region
      _
    $region9: #{tpu_custom_call.1} parent=1 // pred_fallthru
      _
    // Predicated region
    $region10: #{tpu_custom_call.1} parent=1 // pred_check
      _
    $region11: #{tpu_custom_call.1} parent=1 // pred_check_branch
      %18 = sbr.rel (0) target = $region13
    $region12: #{tpu_custom_call.1} parent=1 // pred_region
      _
    $region13: #{tpu_custom_call.1} parent=1 // pred_fallthru
      _
    // Predicated region
    $region14: #{tpu_custom_call.1} parent=1 // pred_check
      _
    $region15: #{tpu_custom_call.1} parent=1 // pred_check_branch
      %20 = sbr.rel (0) target = $region17
    $region16: #{tpu_custom_call.1} parent=1 // pred_region
      _
    $region17: #{tpu_custom_call.1} parent=1 // pred_fallthru
      _
    %p21 = scmp.eq.s32.totalorder 0, 0
    // Predicated region
    $region18: #{tpu_custom_call.1} parent=1 // pred_check
      %p22 = pneg %p21
    $region19: #{tpu_custom_call.1} parent=1 // pred_check_branch
      %24 = sbr.rel (%p22) target = $region21
    $region20: #{tpu_custom_call.1} parent=1 // pred_region
      %25 = vst [vmem:[#allocation2] sm:$0x1] 0.0
      %26 = vst [vmem:[#allocation3] sm:$0x1] 0.0
    $region21: #{tpu_custom_call.1} parent=1 // pred_fallthru
      _
    %v27 = vld [vmem:[%s0] sm:$0xff]
    %v28 = vld [vmem:[%s0 + $0x8] sm:$0xff]
    %v29 = vld [vmem:[%s0 + $0x10] sm:$0xff]
    %v30 = vld [vmem:[%s0 + $0x18] sm:$0xff]
    %v31 = vld [vmem:[%s0 + $0x20] sm:$0xff]
    %v32 = vld [vmem:[%s0 + $0x28] sm:$0xff]
    %v33 = vld [vmem:[%s0 + $0x30] sm:$0xff]
    %v34 = vld [vmem:[%s0 + $0x38] sm:$0xff]
    %v35 = vld [vmem:[%s0 + $0x40] sm:$0xff]
    %v36 = vld [vmem:[%s0 + $0x48] sm:$0xff]
    %v37 = vld [vmem:[%s0 + $0x50] sm:$0xff]
    %v38 = vld [vmem:[%s0 + $0x58] sm:$0xff]
    %v39 = vld [vmem:[%s0 + $0x60] sm:$0xff]
    %v40 = vld [vmem:[%s0 + $0x68] sm:$0xff]
    %v41 = vld [vmem:[%s0 + $0x70] sm:$0xff]
    %v42 = vld [vmem:[%s0 + $0x78] sm:$0xff]
    %v43 = vld [vmem:[%s1] sm:$0xff]
    %v44 = vld [vmem:[%s1 + $0x8] sm:$0xff]
    %v45 = vld [vmem:[%s1 + $0x10] sm:$0xff]
    %v46 = vld [vmem:[%s1 + $0x18] sm:$0xff]
    %v47 = vld [vmem:[%s1 + $0x20] sm:$0xff]
    %v48 = vld [vmem:[%s1 + $0x28] sm:$0xff]
    %v49 = vld [vmem:[%s1 + $0x30] sm:$0xff]
    %v50 = vld [vmem:[%s1 + $0x38] sm:$0xff]
    %v51 = vld [vmem:[%s1 + $0x40] sm:$0xff]
    %v52 = vld [vmem:[%s1 + $0x48] sm:$0xff]
    %v53 = vld [vmem:[%s1 + $0x50] sm:$0xff]
    %v54 = vld [vmem:[%s1 + $0x58] sm:$0xff]
    %v55 = vld [vmem:[%s1 + $0x60] sm:$0xff]
    %v56 = vld [vmem:[%s1 + $0x68] sm:$0xff]
    %v57 = vld [vmem:[%s1 + $0x70] sm:$0xff]
    %v58 = vld [vmem:[%s1 + $0x78] sm:$0xff]
    %v59 = vld [vmem:[%s2] sm:$0x1]
    %v60 = vld [vmem:[%s3] sm:$0x1]
    %v62 = vlaneseq
    %v63 = vshrl.u32 %v62, 7
    %v64 = vsub.s32 0, %v63
    %v65 = vrot.slane %v59, %v64
    %v67 = vmul.f32 %v27, %v65
    %v68 = vmul.f32 %v28, %v65
    %v69 = vmul.f32 %v29, %v65
    %v70 = vmul.f32 %v30, %v65
    %v71 = vmul.f32 %v31, %v65
    %v72 = vmul.f32 %v32, %v65
    %v73 = vmul.f32 %v33, %v65
    %v74 = vmul.f32 %v34, %v65
    %v75 = vmul.f32 %v35, %v65
    %v76 = vmul.f32 %v36, %v65
    %v77 = vmul.f32 %v37, %v65
    %v78 = vmul.f32 %v38, %v65
    %v79 = vmul.f32 %v39, %v65
    %v80 = vmul.f32 %v40, %v65
    %v81 = vmul.f32 %v41, %v65
    %v82 = vmul.f32 %v42, %v65
    %vm83 = vcmask 261120
    %v84 = vsel %vm83, %v67, 0.0
    %85 = vadd.xlane.f32.xlu0 %v84
    %v86 = vpop.xlane.xlu0 %85
    %v87 = vsel %vm83, %v68, 0.0
    %88 = vadd.xlane.f32.xlu0 %v87
    %v89 = vpop.xlane.xlu0 %88
    %v90 = vsel %vm83, %v69, 0.0
    %91 = vadd.xlane.f32.xlu0 %v90
    %v92 = vpop.xlane.xlu0 %91
    %v93 = vsel %vm83, %v70, 0.0
    %94 = vadd.xlane.f32.xlu0 %v93
    %v95 = vpop.xlane.xlu0 %94
    %v96 = vsel %vm83, %v71, 0.0
    %97 = vadd.xlane.f32.xlu0 %v96
    %v98 = vpop.xlane.xlu0 %97
    %v99 = vsel %vm83, %v72, 0.0
    %100 = vadd.xlane.f32.xlu0 %v99
    %v101 = vpop.xlane.xlu0 %100
    %v102 = vsel %vm83, %v73, 0.0
    %103 = vadd.xlane.f32.xlu0 %v102
    %v104 = vpop.xlane.xlu0 %103
    %v105 = vsel %vm83, %v74, 0.0
    %106 = vadd.xlane.f32.xlu0 %v105
    %v107 = vpop.xlane.xlu0 %106
    %v108 = vsel %vm83, %v75, 0.0
    %109 = vadd.xlane.f32.xlu0 %v108
    %v110 = vpop.xlane.xlu0 %109
    %v111 = vsel %vm83, %v76, 0.0
    %112 = vadd.xlane.f32.xlu0 %v111
    %v113 = vpop.xlane.xlu0 %112
    %v114 = vsel %vm83, %v77, 0.0
    %115 = vadd.xlane.f32.xlu0 %v114
    %v116 = vpop.xlane.xlu0 %115
    %v117 = vsel %vm83, %v78, 0.0
    %118 = vadd.xlane.f32.xlu0 %v117
    %v119 = vpop.xlane.xlu0 %118
    %v120 = vsel %vm83, %v79, 0.0
    %121 = vadd.xlane.f32.xlu0 %v120
    %v122 = vpop.xlane.xlu0 %121
    %v123 = vsel %vm83, %v80, 0.0
    %124 = vadd.xlane.f32.xlu0 %v123
    %v125 = vpop.xlane.xlu0 %124
    %v126 = vsel %vm83, %v81, 0.0
    %127 = vadd.xlane.f32.xlu0 %v126
    %v128 = vpop.xlane.xlu0 %127
    %v129 = vsel %vm83, %v82, 0.0
    %130 = vadd.xlane.f32.xlu0 %v129
    %v131 = vpop.xlane.xlu0 %130
    %v133 = vlaneseq
    %v134 = vshrl.u32 %v133, 7
    %v135 = vsub.s32 0, %v134
    %v136 = vrot.slane %v60, %v135
    %v138 = vmul.f32 %v43, %v136
    %v139 = vmul.f32 %v44, %v136
    %v140 = vmul.f32 %v45, %v136
    %v141 = vmul.f32 %v46, %v136
    %v142 = vmul.f32 %v47, %v136
    %v143 = vmul.f32 %v48, %v136
    %v144 = vmul.f32 %v49, %v136
    %v145 = vmul.f32 %v50, %v136
    %v146 = vmul.f32 %v51, %v136
    %v147 = vmul.f32 %v52, %v136
    %v148 = vmul.f32 %v53, %v136
    %v149 = vmul.f32 %v54, %v136
    %v150 = vmul.f32 %v55, %v136
    %v151 = vmul.f32 %v56, %v136
    %v152 = vmul.f32 %v57, %v136
    %v153 = vmul.f32 %v58, %v136
    %v154 = vsel %vm83, %v138, 0.0
    %155 = vadd.xlane.f32.xlu0 %v154
    %v156 = vpop.xlane.xlu0 %155
    %v157 = vsel %vm83, %v139, 0.0
    %158 = vadd.xlane.f32.xlu0 %v157
    %v159 = vpop.xlane.xlu0 %158
    %v160 = vsel %vm83, %v140, 0.0
    %161 = vadd.xlane.f32.xlu0 %v160
    %v162 = vpop.xlane.xlu0 %161
    %v163 = vsel %vm83, %v141, 0.0
    %164 = vadd.xlane.f32.xlu0 %v163
    %v165 = vpop.xlane.xlu0 %164
    %v166 = vsel %vm83, %v142, 0.0
    %167 = vadd.xlane.f32.xlu0 %v166
    %v168 = vpop.xlane.xlu0 %167
    %v169 = vsel %vm83, %v143, 0.0
    %170 = vadd.xlane.f32.xlu0 %v169
    %v171 = vpop.xlane.xlu0 %170
    %v172 = vsel %vm83, %v144, 0.0
    %173 = vadd.xlane.f32.xlu0 %v172
    %v174 = vpop.xlane.xlu0 %173
    %v175 = vsel %vm83, %v145, 0.0
    %176 = vadd.xlane.f32.xlu0 %v175
    %v177 = vpop.xlane.xlu0 %176
    %v178 = vsel %vm83, %v146, 0.0
    %179 = vadd.xlane.f32.xlu0 %v178
    %v180 = vpop.xlane.xlu0 %179
    %v181 = vsel %vm83, %v147, 0.0
    %182 = vadd.xlane.f32.xlu0 %v181
    %v183 = vpop.xlane.xlu0 %182
    %v184 = vsel %vm83, %v148, 0.0
    %185 = vadd.xlane.f32.xlu0 %v184
    %v186 = vpop.xlane.xlu0 %185
    %v187 = vsel %vm83, %v149, 0.0
    %188 = vadd.xlane.f32.xlu0 %v187
    %v189 = vpop.xlane.xlu0 %188
    %v190 = vsel %vm83, %v150, 0.0
    %191 = vadd.xlane.f32.xlu0 %v190
    %v192 = vpop.xlane.xlu0 %191
    %v193 = vsel %vm83, %v151, 0.0
    %194 = vadd.xlane.f32.xlu0 %v193
    %v195 = vpop.xlane.xlu0 %194
    %v196 = vsel %vm83, %v152, 0.0
    %197 = vadd.xlane.f32.xlu0 %v196
    %v198 = vpop.xlane.xlu0 %197
    %v199 = vsel %vm83, %v153, 0.0
    %200 = vadd.xlane.f32.xlu0 %v199
    %v201 = vpop.xlane.xlu0 %200
    %v202 = vld [vmem:[#allocation2] sm:$0x1]
    %v219 = vlaneseq
    %v220 = vshrl.u32 %v219, 7
    %v221 = vsub.s32 0, %v220
    %v222 = vrot.slane %v86, %v221
    %v223 = vlaneseq
    %v224 = vshrl.u32 %v223, 7
    %v225 = vsub.s32 1, %v224
    %v226 = vrot.slane %v86, %v225
    %v227 = vlaneseq
    %v228 = vshrl.u32 %v227, 7
    %v229 = vsub.s32 2, %v228
    %v230 = vrot.slane %v86, %v229
    %v231 = vlaneseq
    %v232 = vshrl.u32 %v231, 7
    %v233 = vsub.s32 3, %v232
    %v234 = vrot.slane %v86, %v233
    %v235 = vlaneseq
    %v236 = vshrl.u32 %v235, 7
    %v237 = vsub.s32 4, %v236
    %v238 = vrot.slane %v86, %v237
    %v239 = vlaneseq
    %v240 = vshrl.u32 %v239, 7
    %v241 = vsub.s32 5, %v240
    %v242 = vrot.slane %v86, %v241
    %v243 = vlaneseq
    %v244 = vshrl.u32 %v243, 7
    %v245 = vsub.s32 6, %v244
    %v246 = vrot.slane %v86, %v245
    %v247 = vlaneseq
    %v248 = vshrl.u32 %v247, 7
    %v249 = vsub.s32 7, %v248
    %v250 = vrot.slane %v86, %v249
    %v251 = vlaneseq
    %v252 = vshrl.u32 %v251, 7
    %v253 = vsub.s32 0, %v252
    %v254 = vrot.slane %v89, %v253
    %v255 = vlaneseq
    %v256 = vshrl.u32 %v255, 7
    %v257 = vsub.s32 1, %v256
    %v258 = vrot.slane %v89, %v257
    %v259 = vlaneseq
    %v260 = vshrl.u32 %v259, 7
    %v261 = vsub.s32 2, %v260
    %v262 = vrot.slane %v89, %v261
    %v263 = vlaneseq
    %v264 = vshrl.u32 %v263, 7
    %v265 = vsub.s32 3, %v264
    %v266 = vrot.slane %v89, %v265
    %v267 = vlaneseq
    %v268 = vshrl.u32 %v267, 7
    %v269 = vsub.s32 4, %v268
    %v270 = vrot.slane %v89, %v269
    %v271 = vlaneseq
    %v272 = vshrl.u32 %v271, 7
    %v273 = vsub.s32 5, %v272
    %v274 = vrot.slane %v89, %v273
    %v275 = vlaneseq
    %v276 = vshrl.u32 %v275, 7
    %v277 = vsub.s32 6, %v276
    %v278 = vrot.slane %v89, %v277
    %v279 = vlaneseq
    %v280 = vshrl.u32 %v279, 7
    %v281 = vsub.s32 7, %v280
    %v282 = vrot.slane %v89, %v281
    %v283 = vlaneseq
    %v284 = vshrl.u32 %v283, 7
    %v285 = vsub.s32 0, %v284
    %v286 = vrot.slane %v92, %v285
    %v287 = vlaneseq
    %v288 = vshrl.u32 %v287, 7
    %v289 = vsub.s32 1, %v288
    %v290 = vrot.slane %v92, %v289
    %v291 = vlaneseq
    %v292 = vshrl.u32 %v291, 7
    %v293 = vsub.s32 2, %v292
    %v294 = vrot.slane %v92, %v293
    %v295 = vlaneseq
    %v296 = vshrl.u32 %v295, 7
    %v297 = vsub.s32 3, %v296
    %v298 = vrot.slane %v92, %v297
    %v299 = vlaneseq
    %v300 = vshrl.u32 %v299, 7
    %v301 = vsub.s32 4, %v300
    %v302 = vrot.slane %v92, %v301
    %v303 = vlaneseq
    %v304 = vshrl.u32 %v303, 7
    %v305 = vsub.s32 5, %v304
    %v306 = vrot.slane %v92, %v305
    %v307 = vlaneseq
    %v308 = vshrl.u32 %v307, 7
    %v309 = vsub.s32 6, %v308
    %v310 = vrot.slane %v92, %v309
    %v311 = vlaneseq
    %v312 = vshrl.u32 %v311, 7
    %v313 = vsub.s32 7, %v312
    %v314 = vrot.slane %v92, %v313
    %v315 = vlaneseq
    %v316 = vshrl.u32 %v315, 7
    %v317 = vsub.s32 0, %v316
    %v318 = vrot.slane %v95, %v317
    %v319 = vlaneseq
    %v320 = vshrl.u32 %v319, 7
    %v321 = vsub.s32 1, %v320
    %v322 = vrot.slane %v95, %v321
    %v323 = vlaneseq
    %v324 = vshrl.u32 %v323, 7
    %v325 = vsub.s32 2, %v324
    %v326 = vrot.slane %v95, %v325
    %v327 = vlaneseq
    %v328 = vshrl.u32 %v327, 7
    %v329 = vsub.s32 3, %v328
    %v330 = vrot.slane %v95, %v329
    %v331 = vlaneseq
    %v332 = vshrl.u32 %v331, 7
    %v333 = vsub.s32 4, %v332
    %v334 = vrot.slane %v95, %v333
    %v335 = vlaneseq
    %v336 = vshrl.u32 %v335, 7
    %v337 = vsub.s32 5, %v336
    %v338 = vrot.slane %v95, %v337
    %v339 = vlaneseq
    %v340 = vshrl.u32 %v339, 7
    %v341 = vsub.s32 6, %v340
    %v342 = vrot.slane %v95, %v341
    %v343 = vlaneseq
    %v344 = vshrl.u32 %v343, 7
    %v345 = vsub.s32 7, %v344
    %v346 = vrot.slane %v95, %v345
    %v347 = vlaneseq
    %v348 = vshrl.u32 %v347, 7
    %v349 = vsub.s32 0, %v348
    %v350 = vrot.slane %v98, %v349
    %v351 = vlaneseq
    %v352 = vshrl.u32 %v351, 7
    %v353 = vsub.s32 1, %v352
    %v354 = vrot.slane %v98, %v353
    %v355 = vlaneseq
    %v356 = vshrl.u32 %v355, 7
    %v357 = vsub.s32 2, %v356
    %v358 = vrot.slane %v98, %v357
    %v359 = vlaneseq
    %v360 = vshrl.u32 %v359, 7
    %v361 = vsub.s32 3, %v360
    %v362 = vrot.slane %v98, %v361
    %v363 = vlaneseq
    %v364 = vshrl.u32 %v363, 7
    %v365 = vsub.s32 4, %v364
    %v366 = vrot.slane %v98, %v365
    %v367 = vlaneseq
    %v368 = vshrl.u32 %v367, 7
    %v369 = vsub.s32 5, %v368
    %v370 = vrot.slane %v98, %v369
    %v371 = vlaneseq
    %v372 = vshrl.u32 %v371, 7
    %v373 = vsub.s32 6, %v372
    %v374 = vrot.slane %v98, %v373
    %v375 = vlaneseq
    %v376 = vshrl.u32 %v375, 7
    %v377 = vsub.s32 7, %v376
    %v378 = vrot.slane %v98, %v377
    %v379 = vlaneseq
    %v380 = vshrl.u32 %v379, 7
    %v381 = vsub.s32 0, %v380
    %v382 = vrot.slane %v101, %v381
    %v383 = vlaneseq
    %v384 = vshrl.u32 %v383, 7
    %v385 = vsub.s32 1, %v384
    %v386 = vrot.slane %v101, %v385
    %v387 = vlaneseq
    %v388 = vshrl.u32 %v387, 7
    %v389 = vsub.s32 2, %v388
    %v390 = vrot.slane %v101, %v389
    %v391 = vlaneseq
    %v392 = vshrl.u32 %v391, 7
    %v393 = vsub.s32 3, %v392
    %v394 = vrot.slane %v101, %v393
    %v395 = vlaneseq
    %v396 = vshrl.u32 %v395, 7
    %v397 = vsub.s32 4, %v396
    %v398 = vrot.slane %v101, %v397
    %v399 = vlaneseq
    %v400 = vshrl.u32 %v399, 7
    %v401 = vsub.s32 5, %v400
    %v402 = vrot.slane %v101, %v401
    %v403 = vlaneseq
    %v404 = vshrl.u32 %v403, 7
    %v405 = vsub.s32 6, %v404
    %v406 = vrot.slane %v101, %v405
    %v407 = vlaneseq
    %v408 = vshrl.u32 %v407, 7
    %v409 = vsub.s32 7, %v408
    %v410 = vrot.slane %v101, %v409
    %v411 = vlaneseq
    %v412 = vshrl.u32 %v411, 7
    %v413 = vsub.s32 0, %v412
    %v414 = vrot.slane %v104, %v413
    %v415 = vlaneseq
    %v416 = vshrl.u32 %v415, 7
    %v417 = vsub.s32 1, %v416
    %v418 = vrot.slane %v104, %v417
    %v419 = vlaneseq
    %v420 = vshrl.u32 %v419, 7
    %v421 = vsub.s32 2, %v420
    %v422 = vrot.slane %v104, %v421
    %v423 = vlaneseq
    %v424 = vshrl.u32 %v423, 7
    %v425 = vsub.s32 3, %v424
    %v426 = vrot.slane %v104, %v425
    %v427 = vlaneseq
    %v428 = vshrl.u32 %v427, 7
    %v429 = vsub.s32 4, %v428
    %v430 = vrot.slane %v104, %v429
    %v431 = vlaneseq
    %v432 = vshrl.u32 %v431, 7
    %v433 = vsub.s32 5, %v432
    %v434 = vrot.slane %v104, %v433
    %v435 = vlaneseq
    %v436 = vshrl.u32 %v435, 7
    %v437 = vsub.s32 6, %v436
    %v438 = vrot.slane %v104, %v437
    %v439 = vlaneseq
    %v440 = vshrl.u32 %v439, 7
    %v441 = vsub.s32 7, %v440
    %v442 = vrot.slane %v104, %v441
    %v443 = vlaneseq
    %v444 = vshrl.u32 %v443, 7
    %v445 = vsub.s32 0, %v444
    %v446 = vrot.slane %v107, %v445
    %v447 = vlaneseq
    %v448 = vshrl.u32 %v447, 7
    %v449 = vsub.s32 1, %v448
    %v450 = vrot.slane %v107, %v449
    %v451 = vlaneseq
    %v452 = vshrl.u32 %v451, 7
    %v453 = vsub.s32 2, %v452
    %v454 = vrot.slane %v107, %v453
    %v455 = vlaneseq
    %v456 = vshrl.u32 %v455, 7
    %v457 = vsub.s32 3, %v456
    %v458 = vrot.slane %v107, %v457
    %v459 = vlaneseq
    %v460 = vshrl.u32 %v459, 7
    %v461 = vsub.s32 4, %v460
    %v462 = vrot.slane %v107, %v461
    %v463 = vlaneseq
    %v464 = vshrl.u32 %v463, 7
    %v465 = vsub.s32 5, %v464
    %v466 = vrot.slane %v107, %v465
    %v467 = vlaneseq
    %v468 = vshrl.u32 %v467, 7
    %v469 = vsub.s32 6, %v468
    %v470 = vrot.slane %v107, %v469
    %v471 = vlaneseq
    %v472 = vshrl.u32 %v471, 7
    %v473 = vsub.s32 7, %v472
    %v474 = vrot.slane %v107, %v473
    %v475 = vlaneseq
    %v476 = vshrl.u32 %v475, 7
    %v477 = vsub.s32 0, %v476
    %v478 = vrot.slane %v110, %v477
    %v479 = vlaneseq
    %v480 = vshrl.u32 %v479, 7
    %v481 = vsub.s32 1, %v480
    %v482 = vrot.slane %v110, %v481
    %v483 = vlaneseq
    %v484 = vshrl.u32 %v483, 7
    %v485 = vsub.s32 2, %v484
    %v486 = vrot.slane %v110, %v485
    %v487 = vlaneseq
    %v488 = vshrl.u32 %v487, 7
    %v489 = vsub.s32 3, %v488
    %v490 = vrot.slane %v110, %v489
    %v491 = vlaneseq
    %v492 = vshrl.u32 %v491, 7
    %v493 = vsub.s32 4, %v492
    %v494 = vrot.slane %v110, %v493
    %v495 = vlaneseq
    %v496 = vshrl.u32 %v495, 7
    %v497 = vsub.s32 5, %v496
    %v498 = vrot.slane %v110, %v497
    %v499 = vlaneseq
    %v500 = vshrl.u32 %v499, 7
    %v501 = vsub.s32 6, %v500
    %v502 = vrot.slane %v110, %v501
    %v503 = vlaneseq
    %v504 = vshrl.u32 %v503, 7
    %v505 = vsub.s32 7, %v504
    %v506 = vrot.slane %v110, %v505
    %v507 = vlaneseq
    %v508 = vshrl.u32 %v507, 7
    %v509 = vsub.s32 0, %v508
    %v510 = vrot.slane %v113, %v509
    %v511 = vlaneseq
    %v512 = vshrl.u32 %v511, 7
    %v513 = vsub.s32 1, %v512
    %v514 = vrot.slane %v113, %v513
    %v515 = vlaneseq
    %v516 = vshrl.u32 %v515, 7
    %v517 = vsub.s32 2, %v516
    %v518 = vrot.slane %v113, %v517
    %v519 = vlaneseq
    %v520 = vshrl.u32 %v519, 7
    %v521 = vsub.s32 3, %v520
    %v522 = vrot.slane %v113, %v521
    %v523 = vlaneseq
    %v524 = vshrl.u32 %v523, 7
    %v525 = vsub.s32 4, %v524
    %v526 = vrot.slane %v113, %v525
    %v527 = vlaneseq
    %v528 = vshrl.u32 %v527, 7
    %v529 = vsub.s32 5, %v528
    %v530 = vrot.slane %v113, %v529
    %v531 = vlaneseq
    %v532 = vshrl.u32 %v531, 7
    %v533 = vsub.s32 6, %v532
    %v534 = vrot.slane %v113, %v533
    %v535 = vlaneseq
    %v536 = vshrl.u32 %v535, 7
    %v537 = vsub.s32 7, %v536
    %v538 = vrot.slane %v113, %v537
    %v539 = vlaneseq
    %v540 = vshrl.u32 %v539, 7
    %v541 = vsub.s32 0, %v540
    %v542 = vrot.slane %v116, %v541
    %v543 = vlaneseq
    %v544 = vshrl.u32 %v543, 7
    %v545 = vsub.s32 1, %v544
    %v546 = vrot.slane %v116, %v545
    %v547 = vlaneseq
    %v548 = vshrl.u32 %v547, 7
    %v549 = vsub.s32 2, %v548
    %v550 = vrot.slane %v116, %v549
    %v551 = vlaneseq
    %v552 = vshrl.u32 %v551, 7
    %v553 = vsub.s32 3, %v552
    %v554 = vrot.slane %v116, %v553
    %v555 = vlaneseq
    %v556 = vshrl.u32 %v555, 7
    %v557 = vsub.s32 4, %v556
    %v558 = vrot.slane %v116, %v557
    %v559 = vlaneseq
    %v560 = vshrl.u32 %v559, 7
    %v561 = vsub.s32 5, %v560
    %v562 = vrot.slane %v116, %v561
    %v563 = vlaneseq
    %v564 = vshrl.u32 %v563, 7
    %v565 = vsub.s32 6, %v564
    %v566 = vrot.slane %v116, %v565
    %v567 = vlaneseq
    %v568 = vshrl.u32 %v567, 7
    %v569 = vsub.s32 7, %v568
    %v570 = vrot.slane %v116, %v569
    %v571 = vlaneseq
    %v572 = vshrl.u32 %v571, 7
    %v573 = vsub.s32 0, %v572
    %v574 = vrot.slane %v119, %v573
    %v575 = vlaneseq
    %v576 = vshrl.u32 %v575, 7
    %v577 = vsub.s32 1, %v576
    %v578 = vrot.slane %v119, %v577
    %v579 = vlaneseq
    %v580 = vshrl.u32 %v579, 7
    %v581 = vsub.s32 2, %v580
    %v582 = vrot.slane %v119, %v581
    %v583 = vlaneseq
    %v584 = vshrl.u32 %v583, 7
    %v585 = vsub.s32 3, %v584
    %v586 = vrot.slane %v119, %v585
    %v587 = vlaneseq
    %v588 = vshrl.u32 %v587, 7
    %v589 = vsub.s32 4, %v588
    %v590 = vrot.slane %v119, %v589
    %v591 = vlaneseq
    %v592 = vshrl.u32 %v591, 7
    %v593 = vsub.s32 5, %v592
    %v594 = vrot.slane %v119, %v593
    %v595 = vlaneseq
    %v596 = vshrl.u32 %v595, 7
    %v597 = vsub.s32 6, %v596
    %v598 = vrot.slane %v119, %v597
    %v599 = vlaneseq
    %v600 = vshrl.u32 %v599, 7
    %v601 = vsub.s32 7, %v600
    %v602 = vrot.slane %v119, %v601
    %v603 = vlaneseq
    %v604 = vshrl.u32 %v603, 7
    %v605 = vsub.s32 0, %v604
    %v606 = vrot.slane %v122, %v605
    %v607 = vlaneseq
    %v608 = vshrl.u32 %v607, 7
    %v609 = vsub.s32 1, %v608
    %v610 = vrot.slane %v122, %v609
    %v611 = vlaneseq
    %v612 = vshrl.u32 %v611, 7
    %v613 = vsub.s32 2, %v612
    %v614 = vrot.slane %v122, %v613
    %v615 = vlaneseq
    %v616 = vshrl.u32 %v615, 7
    %v617 = vsub.s32 3, %v616
    %v618 = vrot.slane %v122, %v617
    %v619 = vlaneseq
    %v620 = vshrl.u32 %v619, 7
    %v621 = vsub.s32 4, %v620
    %v622 = vrot.slane %v122, %v621
    %v623 = vlaneseq
    %v624 = vshrl.u32 %v623, 7
    %v625 = vsub.s32 5, %v624
    %v626 = vrot.slane %v122, %v625
    %v627 = vlaneseq
    %v628 = vshrl.u32 %v627, 7
    %v629 = vsub.s32 6, %v628
    %v630 = vrot.slane %v122, %v629
    %v631 = vlaneseq
    %v632 = vshrl.u32 %v631, 7
    %v633 = vsub.s32 7, %v632
    %v634 = vrot.slane %v122, %v633
    %v635 = vlaneseq
    %v636 = vshrl.u32 %v635, 7
    %v637 = vsub.s32 0, %v636
    %v638 = vrot.slane %v125, %v637
    %v639 = vlaneseq
    %v640 = vshrl.u32 %v639, 7
    %v641 = vsub.s32 1, %v640
    %v642 = vrot.slane %v125, %v641
    %v643 = vlaneseq
    %v644 = vshrl.u32 %v643, 7
    %v645 = vsub.s32 2, %v644
    %v646 = vrot.slane %v125, %v645
    %v647 = vlaneseq
    %v648 = vshrl.u32 %v647, 7
    %v649 = vsub.s32 3, %v648
    %v650 = vrot.slane %v125, %v649
    %v651 = vlaneseq
    %v652 = vshrl.u32 %v651, 7
    %v653 = vsub.s32 4, %v652
    %v654 = vrot.slane %v125, %v653
    %v655 = vlaneseq
    %v656 = vshrl.u32 %v655, 7
    %v657 = vsub.s32 5, %v656
    %v658 = vrot.slane %v125, %v657
    %v659 = vlaneseq
    %v660 = vshrl.u32 %v659, 7
    %v661 = vsub.s32 6, %v660
    %v662 = vrot.slane %v125, %v661
    %v663 = vlaneseq
    %v664 = vshrl.u32 %v663, 7
    %v665 = vsub.s32 7, %v664
    %v666 = vrot.slane %v125, %v665
    %v667 = vlaneseq
    %v668 = vshrl.u32 %v667, 7
    %v669 = vsub.s32 0, %v668
    %v670 = vrot.slane %v128, %v669
    %v671 = vlaneseq
    %v672 = vshrl.u32 %v671, 7
    %v673 = vsub.s32 1, %v672
    %v674 = vrot.slane %v128, %v673
    %v675 = vlaneseq
    %v676 = vshrl.u32 %v675, 7
    %v677 = vsub.s32 2, %v676
    %v678 = vrot.slane %v128, %v677
    %v679 = vlaneseq
    %v680 = vshrl.u32 %v679, 7
    %v681 = vsub.s32 3, %v680
    %v682 = vrot.slane %v128, %v681
    %v683 = vlaneseq
    %v684 = vshrl.u32 %v683, 7
    %v685 = vsub.s32 4, %v684
    %v686 = vrot.slane %v128, %v685
    %v687 = vlaneseq
    %v688 = vshrl.u32 %v687, 7
    %v689 = vsub.s32 5, %v688
    %v690 = vrot.slane %v128, %v689
    %v691 = vlaneseq
    %v692 = vshrl.u32 %v691, 7
    %v693 = vsub.s32 6, %v692
    %v694 = vrot.slane %v128, %v693
    %v695 = vlaneseq
    %v696 = vshrl.u32 %v695, 7
    %v697 = vsub.s32 7, %v696
    %v698 = vrot.slane %v128, %v697
    %v699 = vlaneseq
    %v700 = vshrl.u32 %v699, 7
    %v701 = vsub.s32 0, %v700
    %v702 = vrot.slane %v131, %v701
    %v703 = vlaneseq
    %v704 = vshrl.u32 %v703, 7
    %v705 = vsub.s32 1, %v704
    %v706 = vrot.slane %v131, %v705
    %v707 = vlaneseq
    %v708 = vshrl.u32 %v707, 7
    %v709 = vsub.s32 2, %v708
    %v710 = vrot.slane %v131, %v709
    %v711 = vlaneseq
    %v712 = vshrl.u32 %v711, 7
    %v713 = vsub.s32 3, %v712
    %v714 = vrot.slane %v131, %v713
    %v715 = vlaneseq
    %v716 = vshrl.u32 %v715, 7
    %v717 = vsub.s32 4, %v716
    %v718 = vrot.slane %v131, %v717
    %v719 = vlaneseq
    %v720 = vshrl.u32 %v719, 7
    %v721 = vsub.s32 5, %v720
    %v722 = vrot.slane %v131, %v721
    %v723 = vlaneseq
    %v724 = vshrl.u32 %v723, 7
    %v725 = vsub.s32 6, %v724
    %v726 = vrot.slane %v131, %v725
    %v727 = vlaneseq
    %v728 = vshrl.u32 %v727, 7
    %v729 = vsub.s32 7, %v728
    %v730 = vrot.slane %v131, %v729
    %v731 = vcombine.low %v222, %v226
    %v732 = vcombine.low %v230, %v234
    %v733 = vcombine.low %v238, %v242
    %v734 = vcombine.low %v246, %v250
    %v736 = vunpack.c.l.s4 1966171168
    %v737 = vunpack.c.0.s8 %v736
    %v738 = vlaneseq
    %v739 = vshrl.u32 %v738, 7
    %v740 = vsub.s32 %v737, %v739
    %v741 = vrot.slane %v731, %v740
    %v743 = vunpack.c.l.s4 1966171168
    %v744 = vunpack.c.0.s8 %v743
    %v745 = vlaneseq
    %v746 = vshrl.u32 %v745, 7
    %v747 = vsub.s32 %v744, %v746
    %v748 = vrot.slane %v732, %v747
    %v750 = vunpack.c.l.s4 1966171168
    %v751 = vunpack.c.0.s8 %v750
    %v752 = vlaneseq
    %v753 = vshrl.u32 %v752, 7
    %v754 = vsub.s32 %v751, %v753
    %v755 = vrot.slane %v733, %v754
    %v757 = vunpack.c.l.s4 1966171168
    %v758 = vunpack.c.0.s8 %v757
    %v759 = vlaneseq
    %v760 = vshrl.u32 %v759, 7
    %v761 = vsub.s32 %v758, %v760
    %v762 = vrot.slane %v734, %v761
    %v763 = vcombine.low %v741, %v748
    %v764 = vcombine.low %v755, %v762
    %v766 = vunpack.c.l.s4 1966171168
    %v767 = vunpack.c.0.s8 %v766
    %v768 = vlaneseq
    %v769 = vshrl.u32 %v768, 7
    %v770 = vsub.s32 %v767, %v769
    %v771 = vrot.slane %v763, %v770
    %v773 = vunpack.c.l.s4 1966171168
    %v774 = vunpack.c.0.s8 %v773
    %v775 = vlaneseq
    %v776 = vshrl.u32 %v775, 7
    %v777 = vsub.s32 %v774, %v776
    %v778 = vrot.slane %v764, %v777
    %v779 = vcombine.low %v771, %v778
    %v780 = vcombine.low %v254, %v258
    %v781 = vcombine.low %v262, %v266
    %v782 = vcombine.low %v270, %v274
    %v783 = vcombine.low %v278, %v282
    %v785 = vunpack.c.l.s4 1966171168
    %v786 = vunpack.c.0.s8 %v785
    %v787 = vlaneseq
    %v788 = vshrl.u32 %v787, 7
    %v789 = vsub.s32 %v786, %v788
    %v790 = vrot.slane %v780, %v789
    %v792 = vunpack.c.l.s4 1966171168
    %v793 = vunpack.c.0.s8 %v792
    %v794 = vlaneseq
    %v795 = vshrl.u32 %v794, 7
    %v796 = vsub.s32 %v793, %v795
    %v797 = vrot.slane %v781, %v796
    %v799 = vunpack.c.l.s4 1966171168
    %v800 = vunpack.c.0.s8 %v799
    %v801 = vlaneseq
    %v802 = vshrl.u32 %v801, 7
    %v803 = vsub.s32 %v800, %v802
    %v804 = vrot.slane %v782, %v803
    %v806 = vunpack.c.l.s4 1966171168
    %v807 = vunpack.c.0.s8 %v806
    %v808 = vlaneseq
    %v809 = vshrl.u32 %v808, 7
    %v810 = vsub.s32 %v807, %v809
    %v811 = vrot.slane %v783, %v810
    %v812 = vcombine.low %v790, %v797
    %v813 = vcombine.low %v804, %v811
    %v815 = vunpack.c.l.s4 1966171168
    %v816 = vunpack.c.0.s8 %v815
    %v817 = vlaneseq
    %v818 = vshrl.u32 %v817, 7
    %v819 = vsub.s32 %v816, %v818
    %v820 = vrot.slane %v812, %v819
    %v822 = vunpack.c.l.s4 1966171168
    %v823 = vunpack.c.0.s8 %v822
    %v824 = vlaneseq
    %v825 = vshrl.u32 %v824, 7
    %v826 = vsub.s32 %v823, %v825
    %v827 = vrot.slane %v813, %v826
    %v828 = vcombine.low %v820, %v827
    %v829 = vcombine.low %v286, %v290
    %v830 = vcombine.low %v294, %v298
    %v831 = vcombine.low %v302, %v306
    %v832 = vcombine.low %v310, %v314
    %v834 = vunpack.c.l.s4 1966171168
    %v835 = vunpack.c.0.s8 %v834
    %v836 = vlaneseq
    %v837 = vshrl.u32 %v836, 7
    %v838 = vsub.s32 %v835, %v837
    %v839 = vrot.slane %v829, %v838
    %v841 = vunpack.c.l.s4 1966171168
    %v842 = vunpack.c.0.s8 %v841
    %v843 = vlaneseq
    %v844 = vshrl.u32 %v843, 7
    %v845 = vsub.s32 %v842, %v844
    %v846 = vrot.slane %v830, %v845
    %v848 = vunpack.c.l.s4 1966171168
    %v849 = vunpack.c.0.s8 %v848
    %v850 = vlaneseq
    %v851 = vshrl.u32 %v850, 7
    %v852 = vsub.s32 %v849, %v851
    %v853 = vrot.slane %v831, %v852
    %v855 = vunpack.c.l.s4 1966171168
    %v856 = vunpack.c.0.s8 %v855
    %v857 = vlaneseq
    %v858 = vshrl.u32 %v857, 7
    %v859 = vsub.s32 %v856, %v858
    %v860 = vrot.slane %v832, %v859
    %v861 = vcombine.low %v839, %v846
    %v862 = vcombine.low %v853, %v860
    %v864 = vunpack.c.l.s4 1966171168
    %v865 = vunpack.c.0.s8 %v864
    %v866 = vlaneseq
    %v867 = vshrl.u32 %v866, 7
    %v868 = vsub.s32 %v865, %v867
    %v869 = vrot.slane %v861, %v868
    %v871 = vunpack.c.l.s4 1966171168
    %v872 = vunpack.c.0.s8 %v871
    %v873 = vlaneseq
    %v874 = vshrl.u32 %v873, 7
    %v875 = vsub.s32 %v872, %v874
    %v876 = vrot.slane %v862, %v875
    %v877 = vcombine.low %v869, %v876
    %v878 = vcombine.low %v318, %v322
    %v879 = vcombine.low %v326, %v330
    %v880 = vcombine.low %v334, %v338
    %v881 = vcombine.low %v342, %v346
    %v883 = vunpack.c.l.s4 1966171168
    %v884 = vunpack.c.0.s8 %v883
    %v885 = vlaneseq
    %v886 = vshrl.u32 %v885, 7
    %v887 = vsub.s32 %v884, %v886
    %v888 = vrot.slane %v878, %v887
    %v890 = vunpack.c.l.s4 1966171168
    %v891 = vunpack.c.0.s8 %v890
    %v892 = vlaneseq
    %v893 = vshrl.u32 %v892, 7
    %v894 = vsub.s32 %v891, %v893
    %v895 = vrot.slane %v879, %v894
    %v897 = vunpack.c.l.s4 1966171168
    %v898 = vunpack.c.0.s8 %v897
    %v899 = vlaneseq
    %v900 = vshrl.u32 %v899, 7
    %v901 = vsub.s32 %v898, %v900
    %v902 = vrot.slane %v880, %v901
    %v904 = vunpack.c.l.s4 1966171168
    %v905 = vunpack.c.0.s8 %v904
    %v906 = vlaneseq
    %v907 = vshrl.u32 %v906, 7
    %v908 = vsub.s32 %v905, %v907
    %v909 = vrot.slane %v881, %v908
    %v910 = vcombine.low %v888, %v895
    %v911 = vcombine.low %v902, %v909
    %v913 = vunpack.c.l.s4 1966171168
    %v914 = vunpack.c.0.s8 %v913
    %v915 = vlaneseq
    %v916 = vshrl.u32 %v915, 7
    %v917 = vsub.s32 %v914, %v916
    %v918 = vrot.slane %v910, %v917
    %v920 = vunpack.c.l.s4 1966171168
    %v921 = vunpack.c.0.s8 %v920
    %v922 = vlaneseq
    %v923 = vshrl.u32 %v922, 7
    %v924 = vsub.s32 %v921, %v923
    %v925 = vrot.slane %v911, %v924
    %v926 = vcombine.low %v918, %v925
    %v927 = vcombine.low %v350, %v354
    %v928 = vcombine.low %v358, %v362
    %v929 = vcombine.low %v366, %v370
    %v930 = vcombine.low %v374, %v378
    %v932 = vunpack.c.l.s4 1966171168
    %v933 = vunpack.c.0.s8 %v932
    %v934 = vlaneseq
    %v935 = vshrl.u32 %v934, 7
    %v936 = vsub.s32 %v933, %v935
    %v937 = vrot.slane %v927, %v936
    %v939 = vunpack.c.l.s4 1966171168
    %v940 = vunpack.c.0.s8 %v939
    %v941 = vlaneseq
    %v942 = vshrl.u32 %v941, 7
    %v943 = vsub.s32 %v940, %v942
    %v944 = vrot.slane %v928, %v943
    %v946 = vunpack.c.l.s4 1966171168
    %v947 = vunpack.c.0.s8 %v946
    %v948 = vlaneseq
    %v949 = vshrl.u32 %v948, 7
    %v950 = vsub.s32 %v947, %v949
    %v951 = vrot.slane %v929, %v950
    %v953 = vunpack.c.l.s4 1966171168
    %v954 = vunpack.c.0.s8 %v953
    %v955 = vlaneseq
    %v956 = vshrl.u32 %v955, 7
    %v957 = vsub.s32 %v954, %v956
    %v958 = vrot.slane %v930, %v957
    %v959 = vcombine.low %v937, %v944
    %v960 = vcombine.low %v951, %v958
    %v962 = vunpack.c.l.s4 1966171168
    %v963 = vunpack.c.0.s8 %v962
    %v964 = vlaneseq
    %v965 = vshrl.u32 %v964, 7
    %v966 = vsub.s32 %v963, %v965
    %v967 = vrot.slane %v959, %v966
    %v969 = vunpack.c.l.s4 1966171168
    %v970 = vunpack.c.0.s8 %v969
    %v971 = vlaneseq
    %v972 = vshrl.u32 %v971, 7
    %v973 = vsub.s32 %v970, %v972
    %v974 = vrot.slane %v960, %v973
    %v975 = vcombine.low %v967, %v974
    %v976 = vcombine.low %v382, %v386
    %v977 = vcombine.low %v390, %v394
    %v978 = vcombine.low %v398, %v402
    %v979 = vcombine.low %v406, %v410
    %v981 = vunpack.c.l.s4 1966171168
    %v982 = vunpack.c.0.s8 %v981
    %v983 = vlaneseq
    %v984 = vshrl.u32 %v983, 7
    %v985 = vsub.s32 %v982, %v984
    %v986 = vrot.slane %v976, %v985
    %v988 = vunpack.c.l.s4 1966171168
    %v989 = vunpack.c.0.s8 %v988
    %v990 = vlaneseq
    %v991 = vshrl.u32 %v990, 7
    %v992 = vsub.s32 %v989, %v991
    %v993 = vrot.slane %v977, %v992
    %v995 = vunpack.c.l.s4 1966171168
    %v996 = vunpack.c.0.s8 %v995
    %v997 = vlaneseq
    %v998 = vshrl.u32 %v997, 7
    %v999 = vsub.s32 %v996, %v998
    %v1000 = vrot.slane %v978, %v999
    %v1002 = vunpack.c.l.s4 1966171168
    %v1003 = vunpack.c.0.s8 %v1002
    %v1004 = vlaneseq
    %v1005 = vshrl.u32 %v1004, 7
    %v1006 = vsub.s32 %v1003, %v1005
    %v1007 = vrot.slane %v979, %v1006
    %v1008 = vcombine.low %v986, %v993
    %v1009 = vcombine.low %v1000, %v1007
    %v1011 = vunpack.c.l.s4 1966171168
    %v1012 = vunpack.c.0.s8 %v1011
    %v1013 = vlaneseq
    %v1014 = vshrl.u32 %v1013, 7
    %v1015 = vsub.s32 %v1012, %v1014
    %v1016 = vrot.slane %v1008, %v1015
    %v1018 = vunpack.c.l.s4 1966171168
    %v1019 = vunpack.c.0.s8 %v1018
    %v1020 = vlaneseq
    %v1021 = vshrl.u32 %v1020, 7
    %v1022 = vsub.s32 %v1019, %v1021
    %v1023 = vrot.slane %v1009, %v1022
    %v1024 = vcombine.low %v1016, %v1023
    %v1025 = vcombine.low %v414, %v418
    %v1026 = vcombine.low %v422, %v426
    %v1027 = vcombine.low %v430, %v434
    %v1028 = vcombine.low %v438, %v442
    %v1030 = vunpack.c.l.s4 1966171168
    %v1031 = vunpack.c.0.s8 %v1030
    %v1032 = vlaneseq
    %v1033 = vshrl.u32 %v1032, 7
    %v1034 = vsub.s32 %v1031, %v1033
    %v1035 = vrot.slane %v1025, %v1034
    %v1037 = vunpack.c.l.s4 1966171168
    %v1038 = vunpack.c.0.s8 %v1037
    %v1039 = vlaneseq
    %v1040 = vshrl.u32 %v1039, 7
    %v1041 = vsub.s32 %v1038, %v1040
    %v1042 = vrot.slane %v1026, %v1041
    %v1044 = vunpack.c.l.s4 1966171168
    %v1045 = vunpack.c.0.s8 %v1044
    %v1046 = vlaneseq
    %v1047 = vshrl.u32 %v1046, 7
    %v1048 = vsub.s32 %v1045, %v1047
    %v1049 = vrot.slane %v1027, %v1048
    %v1051 = vunpack.c.l.s4 1966171168
    %v1052 = vunpack.c.0.s8 %v1051
    %v1053 = vlaneseq
    %v1054 = vshrl.u32 %v1053, 7
    %v1055 = vsub.s32 %v1052, %v1054
    %v1056 = vrot.slane %v1028, %v1055
    %v1057 = vcombine.low %v1035, %v1042
    %v1058 = vcombine.low %v1049, %v1056
    %v1060 = vunpack.c.l.s4 1966171168
    %v1061 = vunpack.c.0.s8 %v1060
    %v1062 = vlaneseq
    %v1063 = vshrl.u32 %v1062, 7
    %v1064 = vsub.s32 %v1061, %v1063
    %v1065 = vrot.slane %v1057, %v1064
    %v1067 = vunpack.c.l.s4 1966171168
    %v1068 = vunpack.c.0.s8 %v1067
    %v1069 = vlaneseq
    %v1070 = vshrl.u32 %v1069, 7
    %v1071 = vsub.s32 %v1068, %v1070
    %v1072 = vrot.slane %v1058, %v1071
    %v1073 = vcombine.low %v1065, %v1072
    %v1074 = vcombine.low %v446, %v450
    %v1075 = vcombine.low %v454, %v458
    %v1076 = vcombine.low %v462, %v466
    %v1077 = vcombine.low %v470, %v474
    %v1079 = vunpack.c.l.s4 1966171168
    %v1080 = vunpack.c.0.s8 %v1079
    %v1081 = vlaneseq
    %v1082 = vshrl.u32 %v1081, 7
    %v1083 = vsub.s32 %v1080, %v1082
    %v1084 = vrot.slane %v1074, %v1083
    %v1086 = vunpack.c.l.s4 1966171168
    %v1087 = vunpack.c.0.s8 %v1086
    %v1088 = vlaneseq
    %v1089 = vshrl.u32 %v1088, 7
    %v1090 = vsub.s32 %v1087, %v1089
    %v1091 = vrot.slane %v1075, %v1090
    %v1093 = vunpack.c.l.s4 1966171168
    %v1094 = vunpack.c.0.s8 %v1093
    %v1095 = vlaneseq
    %v1096 = vshrl.u32 %v1095, 7
    %v1097 = vsub.s32 %v1094, %v1096
    %v1098 = vrot.slane %v1076, %v1097
    %v1100 = vunpack.c.l.s4 1966171168
    %v1101 = vunpack.c.0.s8 %v1100
    %v1102 = vlaneseq
    %v1103 = vshrl.u32 %v1102, 7
    %v1104 = vsub.s32 %v1101, %v1103
    %v1105 = vrot.slane %v1077, %v1104
    %v1106 = vcombine.low %v1084, %v1091
    %v1107 = vcombine.low %v1098, %v1105
    %v1109 = vunpack.c.l.s4 1966171168
    %v1110 = vunpack.c.0.s8 %v1109
    %v1111 = vlaneseq
    %v1112 = vshrl.u32 %v1111, 7
    %v1113 = vsub.s32 %v1110, %v1112
    %v1114 = vrot.slane %v1106, %v1113
    %v1116 = vunpack.c.l.s4 1966171168
    %v1117 = vunpack.c.0.s8 %v1116
    %v1118 = vlaneseq
    %v1119 = vshrl.u32 %v1118, 7
    %v1120 = vsub.s32 %v1117, %v1119
    %v1121 = vrot.slane %v1107, %v1120
    %v1122 = vcombine.low %v1114, %v1121
    %v1123 = vcombine.low %v478, %v482
    %v1124 = vcombine.low %v486, %v490
    %v1125 = vcombine.low %v494, %v498
    %v1126 = vcombine.low %v502, %v506
    %v1128 = vunpack.c.l.s4 1966171168
    %v1129 = vunpack.c.0.s8 %v1128
    %v1130 = vlaneseq
    %v1131 = vshrl.u32 %v1130, 7
    %v1132 = vsub.s32 %v1129, %v1131
    %v1133 = vrot.slane %v1123, %v1132
    %v1135 = vunpack.c.l.s4 1966171168
    %v1136 = vunpack.c.0.s8 %v1135
    %v1137 = vlaneseq
    %v1138 = vshrl.u32 %v1137, 7
    %v1139 = vsub.s32 %v1136, %v1138
    %v1140 = vrot.slane %v1124, %v1139
    %v1142 = vunpack.c.l.s4 1966171168
    %v1143 = vunpack.c.0.s8 %v1142
    %v1144 = vlaneseq
    %v1145 = vshrl.u32 %v1144, 7
    %v1146 = vsub.s32 %v1143, %v1145
    %v1147 = vrot.slane %v1125, %v1146
    %v1149 = vunpack.c.l.s4 1966171168
    %v1150 = vunpack.c.0.s8 %v1149
    %v1151 = vlaneseq
    %v1152 = vshrl.u32 %v1151, 7
    %v1153 = vsub.s32 %v1150, %v1152
    %v1154 = vrot.slane %v1126, %v1153
    %v1155 = vcombine.low %v1133, %v1140
    %v1156 = vcombine.low %v1147, %v1154
    %v1158 = vunpack.c.l.s4 1966171168
    %v1159 = vunpack.c.0.s8 %v1158
    %v1160 = vlaneseq
    %v1161 = vshrl.u32 %v1160, 7
    %v1162 = vsub.s32 %v1159, %v1161
    %v1163 = vrot.slane %v1155, %v1162
    %v1165 = vunpack.c.l.s4 1966171168
    %v1166 = vunpack.c.0.s8 %v1165
    %v1167 = vlaneseq
    %v1168 = vshrl.u32 %v1167, 7
    %v1169 = vsub.s32 %v1166, %v1168
    %v1170 = vrot.slane %v1156, %v1169
    %v1171 = vcombine.low %v1163, %v1170
    %v1172 = vcombine.low %v510, %v514
    %v1173 = vcombine.low %v518, %v522
    %v1174 = vcombine.low %v526, %v530
    %v1175 = vcombine.low %v534, %v538
    %v1177 = vunpack.c.l.s4 1966171168
    %v1178 = vunpack.c.0.s8 %v1177
    %v1179 = vlaneseq
    %v1180 = vshrl.u32 %v1179, 7
    %v1181 = vsub.s32 %v1178, %v1180
    %v1182 = vrot.slane %v1172, %v1181
    %v1184 = vunpack.c.l.s4 1966171168
    %v1185 = vunpack.c.0.s8 %v1184
    %v1186 = vlaneseq
    %v1187 = vshrl.u32 %v1186, 7
    %v1188 = vsub.s32 %v1185, %v1187
    %v1189 = vrot.slane %v1173, %v1188
    %v1191 = vunpack.c.l.s4 1966171168
    %v1192 = vunpack.c.0.s8 %v1191
    %v1193 = vlaneseq
    %v1194 = vshrl.u32 %v1193, 7
    %v1195 = vsub.s32 %v1192, %v1194
    %v1196 = vrot.slane %v1174, %v1195
    %v1198 = vunpack.c.l.s4 1966171168
    %v1199 = vunpack.c.0.s8 %v1198
    %v1200 = vlaneseq
    %v1201 = vshrl.u32 %v1200, 7
    %v1202 = vsub.s32 %v1199, %v1201
    %v1203 = vrot.slane %v1175, %v1202
    %v1204 = vcombine.low %v1182, %v1189
    %v1205 = vcombine.low %v1196, %v1203
    %v1207 = vunpack.c.l.s4 1966171168
    %v1208 = vunpack.c.0.s8 %v1207
    %v1209 = vlaneseq
    %v1210 = vshrl.u32 %v1209, 7
    %v1211 = vsub.s32 %v1208, %v1210
    %v1212 = vrot.slane %v1204, %v1211
    %v1214 = vunpack.c.l.s4 1966171168
    %v1215 = vunpack.c.0.s8 %v1214
    %v1216 = vlaneseq
    %v1217 = vshrl.u32 %v1216, 7
    %v1218 = vsub.s32 %v1215, %v1217
    %v1219 = vrot.slane %v1205, %v1218
    %v1220 = vcombine.low %v1212, %v1219
    %v1221 = vcombine.low %v542, %v546
    %v1222 = vcombine.low %v550, %v554
    %v1223 = vcombine.low %v558, %v562
    %v1224 = vcombine.low %v566, %v570
    %v1226 = vunpack.c.l.s4 1966171168
    %v1227 = vunpack.c.0.s8 %v1226
    %v1228 = vlaneseq
    %v1229 = vshrl.u32 %v1228, 7
    %v1230 = vsub.s32 %v1227, %v1229
    %v1231 = vrot.slane %v1221, %v1230
    %v1233 = vunpack.c.l.s4 1966171168
    %v1234 = vunpack.c.0.s8 %v1233
    %v1235 = vlaneseq
    %v1236 = vshrl.u32 %v1235, 7
    %v1237 = vsub.s32 %v1234, %v1236
    %v1238 = vrot.slane %v1222, %v1237
    %v1240 = vunpack.c.l.s4 1966171168
    %v1241 = vunpack.c.0.s8 %v1240
    %v1242 = vlaneseq
    %v1243 = vshrl.u32 %v1242, 7
    %v1244 = vsub.s32 %v1241, %v1243
    %v1245 = vrot.slane %v1223, %v1244
    %v1247 = vunpack.c.l.s4 1966171168
    %v1248 = vunpack.c.0.s8 %v1247
    %v1249 = vlaneseq
    %v1250 = vshrl.u32 %v1249, 7
    %v1251 = vsub.s32 %v1248, %v1250
    %v1252 = vrot.slane %v1224, %v1251
    %v1253 = vcombine.low %v1231, %v1238
    %v1254 = vcombine.low %v1245, %v1252
    %v1256 = vunpack.c.l.s4 1966171168
    %v1257 = vunpack.c.0.s8 %v1256
    %v1258 = vlaneseq
    %v1259 = vshrl.u32 %v1258, 7
    %v1260 = vsub.s32 %v1257, %v1259
    %v1261 = vrot.slane %v1253, %v1260
    %v1263 = vunpack.c.l.s4 1966171168
    %v1264 = vunpack.c.0.s8 %v1263
    %v1265 = vlaneseq
    %v1266 = vshrl.u32 %v1265, 7
    %v1267 = vsub.s32 %v1264, %v1266
    %v1268 = vrot.slane %v1254, %v1267
    %v1269 = vcombine.low %v1261, %v1268
    %v1270 = vcombine.low %v574, %v578
    %v1271 = vcombine.low %v582, %v586
    %v1272 = vcombine.low %v590, %v594
    %v1273 = vcombine.low %v598, %v602
    %v1275 = vunpack.c.l.s4 1966171168
    %v1276 = vunpack.c.0.s8 %v1275
    %v1277 = vlaneseq
    %v1278 = vshrl.u32 %v1277, 7
    %v1279 = vsub.s32 %v1276, %v1278
    %v1280 = vrot.slane %v1270, %v1279
    %v1282 = vunpack.c.l.s4 1966171168
    %v1283 = vunpack.c.0.s8 %v1282
    %v1284 = vlaneseq
    %v1285 = vshrl.u32 %v1284, 7
    %v1286 = vsub.s32 %v1283, %v1285
    %v1287 = vrot.slane %v1271, %v1286
    %v1289 = vunpack.c.l.s4 1966171168
    %v1290 = vunpack.c.0.s8 %v1289
    %v1291 = vlaneseq
    %v1292 = vshrl.u32 %v1291, 7
    %v1293 = vsub.s32 %v1290, %v1292
    %v1294 = vrot.slane %v1272, %v1293
    %v1296 = vunpack.c.l.s4 1966171168
    %v1297 = vunpack.c.0.s8 %v1296
    %v1298 = vlaneseq
    %v1299 = vshrl.u32 %v1298, 7
    %v1300 = vsub.s32 %v1297, %v1299
    %v1301 = vrot.slane %v1273, %v1300
    %v1302 = vcombine.low %v1280, %v1287
    %v1303 = vcombine.low %v1294, %v1301
    %v1305 = vunpack.c.l.s4 1966171168
    %v1306 = vunpack.c.0.s8 %v1305
    %v1307 = vlaneseq
    %v1308 = vshrl.u32 %v1307, 7
    %v1309 = vsub.s32 %v1306, %v1308
    %v1310 = vrot.slane %v1302, %v1309
    %v1312 = vunpack.c.l.s4 1966171168
    %v1313 = vunpack.c.0.s8 %v1312
    %v1314 = vlaneseq
    %v1315 = vshrl.u32 %v1314, 7
    %v1316 = vsub.s32 %v1313, %v1315
    %v1317 = vrot.slane %v1303, %v1316
    %v1318 = vcombine.low %v1310, %v1317
    %v1319 = vcombine.low %v606, %v610
    %v1320 = vcombine.low %v614, %v618
    %v1321 = vcombine.low %v622, %v626
    %v1322 = vcombine.low %v630, %v634
    %v1324 = vunpack.c.l.s4 1966171168
    %v1325 = vunpack.c.0.s8 %v1324
    %v1326 = vlaneseq
    %v1327 = vshrl.u32 %v1326, 7
    %v1328 = vsub.s32 %v1325, %v1327
    %v1329 = vrot.slane %v1319, %v1328
    %v1331 = vunpack.c.l.s4 1966171168
    %v1332 = vunpack.c.0.s8 %v1331
    %v1333 = vlaneseq
    %v1334 = vshrl.u32 %v1333, 7
    %v1335 = vsub.s32 %v1332, %v1334
    %v1336 = vrot.slane %v1320, %v1335
    %v1338 = vunpack.c.l.s4 1966171168
    %v1339 = vunpack.c.0.s8 %v1338
    %v1340 = vlaneseq
    %v1341 = vshrl.u32 %v1340, 7
    %v1342 = vsub.s32 %v1339, %v1341
    %v1343 = vrot.slane %v1321, %v1342
    %v1345 = vunpack.c.l.s4 1966171168
    %v1346 = vunpack.c.0.s8 %v1345
    %v1347 = vlaneseq
    %v1348 = vshrl.u32 %v1347, 7
    %v1349 = vsub.s32 %v1346, %v1348
    %v1350 = vrot.slane %v1322, %v1349
    %v1351 = vcombine.low %v1329, %v1336
    %v1352 = vcombine.low %v1343, %v1350
    %v1354 = vunpack.c.l.s4 1966171168
    %v1355 = vunpack.c.0.s8 %v1354
    %v1356 = vlaneseq
    %v1357 = vshrl.u32 %v1356, 7
    %v1358 = vsub.s32 %v1355, %v1357
    %v1359 = vrot.slane %v1351, %v1358
    %v1361 = vunpack.c.l.s4 1966171168
    %v1362 = vunpack.c.0.s8 %v1361
    %v1363 = vlaneseq
    %v1364 = vshrl.u32 %v1363, 7
    %v1365 = vsub.s32 %v1362, %v1364
    %v1366 = vrot.slane %v1352, %v1365
    %v1367 = vcombine.low %v1359, %v1366
    %v1368 = vcombine.low %v638, %v642
    %v1369 = vcombine.low %v646, %v650
    %v1370 = vcombine.low %v654, %v658
    %v1371 = vcombine.low %v662, %v666
    %v1373 = vunpack.c.l.s4 1966171168
    %v1374 = vunpack.c.0.s8 %v1373
    %v1375 = vlaneseq
    %v1376 = vshrl.u32 %v1375, 7
    %v1377 = vsub.s32 %v1374, %v1376
    %v1378 = vrot.slane %v1368, %v1377
    %v1380 = vunpack.c.l.s4 1966171168
    %v1381 = vunpack.c.0.s8 %v1380
    %v1382 = vlaneseq
    %v1383 = vshrl.u32 %v1382, 7
    %v1384 = vsub.s32 %v1381, %v1383
    %v1385 = vrot.slane %v1369, %v1384
    %v1387 = vunpack.c.l.s4 1966171168
    %v1388 = vunpack.c.0.s8 %v1387
    %v1389 = vlaneseq
    %v1390 = vshrl.u32 %v1389, 7
    %v1391 = vsub.s32 %v1388, %v1390
    %v1392 = vrot.slane %v1370, %v1391
    %v1394 = vunpack.c.l.s4 1966171168
    %v1395 = vunpack.c.0.s8 %v1394
    %v1396 = vlaneseq
    %v1397 = vshrl.u32 %v1396, 7
    %v1398 = vsub.s32 %v1395, %v1397
    %v1399 = vrot.slane %v1371, %v1398
    %v1400 = vcombine.low %v1378, %v1385
    %v1401 = vcombine.low %v1392, %v1399
    %v1403 = vunpack.c.l.s4 1966171168
    %v1404 = vunpack.c.0.s8 %v1403
    %v1405 = vlaneseq
    %v1406 = vshrl.u32 %v1405, 7
    %v1407 = vsub.s32 %v1404, %v1406
    %v1408 = vrot.slane %v1400, %v1407
    %v1410 = vunpack.c.l.s4 1966171168
    %v1411 = vunpack.c.0.s8 %v1410
    %v1412 = vlaneseq
    %v1413 = vshrl.u32 %v1412, 7
    %v1414 = vsub.s32 %v1411, %v1413
    %v1415 = vrot.slane %v1401, %v1414
    %v1416 = vcombine.low %v1408, %v1415
    %v1417 = vcombine.low %v670, %v674
    %v1418 = vcombine.low %v678, %v682
    %v1419 = vcombine.low %v686, %v690
    %v1420 = vcombine.low %v694, %v698
    %v1422 = vunpack.c.l.s4 1966171168
    %v1423 = vunpack.c.0.s8 %v1422
    %v1424 = vlaneseq
    %v1425 = vshrl.u32 %v1424, 7
    %v1426 = vsub.s32 %v1423, %v1425
    %v1427 = vrot.slane %v1417, %v1426
    %v1429 = vunpack.c.l.s4 1966171168
    %v1430 = vunpack.c.0.s8 %v1429
    %v1431 = vlaneseq
    %v1432 = vshrl.u32 %v1431, 7
    %v1433 = vsub.s32 %v1430, %v1432
    %v1434 = vrot.slane %v1418, %v1433
    %v1436 = vunpack.c.l.s4 1966171168
    %v1437 = vunpack.c.0.s8 %v1436
    %v1438 = vlaneseq
    %v1439 = vshrl.u32 %v1438, 7
    %v1440 = vsub.s32 %v1437, %v1439
    %v1441 = vrot.slane %v1419, %v1440
    %v1443 = vunpack.c.l.s4 1966171168
    %v1444 = vunpack.c.0.s8 %v1443
    %v1445 = vlaneseq
    %v1446 = vshrl.u32 %v1445, 7
    %v1447 = vsub.s32 %v1444, %v1446
    %v1448 = vrot.slane %v1420, %v1447
    %v1449 = vcombine.low %v1427, %v1434
    %v1450 = vcombine.low %v1441, %v1448
    %v1452 = vunpack.c.l.s4 1966171168
    %v1453 = vunpack.c.0.s8 %v1452
    %v1454 = vlaneseq
    %v1455 = vshrl.u32 %v1454, 7
    %v1456 = vsub.s32 %v1453, %v1455
    %v1457 = vrot.slane %v1449, %v1456
    %v1459 = vunpack.c.l.s4 1966171168
    %v1460 = vunpack.c.0.s8 %v1459
    %v1461 = vlaneseq
    %v1462 = vshrl.u32 %v1461, 7
    %v1463 = vsub.s32 %v1460, %v1462
    %v1464 = vrot.slane %v1450, %v1463
    %v1465 = vcombine.low %v1457, %v1464
    %v1466 = vcombine.low %v702, %v706
    %v1467 = vcombine.low %v710, %v714
    %v1468 = vcombine.low %v718, %v722
    %v1469 = vcombine.low %v726, %v730
    %v1471 = vunpack.c.l.s4 1966171168
    %v1472 = vunpack.c.0.s8 %v1471
    %v1473 = vlaneseq
    %v1474 = vshrl.u32 %v1473, 7
    %v1475 = vsub.s32 %v1472, %v1474
    %v1476 = vrot.slane %v1466, %v1475
    %v1478 = vunpack.c.l.s4 1966171168
    %v1479 = vunpack.c.0.s8 %v1478
    %v1480 = vlaneseq
    %v1481 = vshrl.u32 %v1480, 7
    %v1482 = vsub.s32 %v1479, %v1481
    %v1483 = vrot.slane %v1467, %v1482
    %v1485 = vunpack.c.l.s4 1966171168
    %v1486 = vunpack.c.0.s8 %v1485
    %v1487 = vlaneseq
    %v1488 = vshrl.u32 %v1487, 7
    %v1489 = vsub.s32 %v1486, %v1488
    %v1490 = vrot.slane %v1468, %v1489
    %v1492 = vunpack.c.l.s4 1966171168
    %v1493 = vunpack.c.0.s8 %v1492
    %v1494 = vlaneseq
    %v1495 = vshrl.u32 %v1494, 7
    %v1496 = vsub.s32 %v1493, %v1495
    %v1497 = vrot.slane %v1469, %v1496
    %v1498 = vcombine.low %v1476, %v1483
    %v1499 = vcombine.low %v1490, %v1497
    %v1501 = vunpack.c.l.s4 1966171168
    %v1502 = vunpack.c.0.s8 %v1501
    %v1503 = vlaneseq
    %v1504 = vshrl.u32 %v1503, 7
    %v1505 = vsub.s32 %v1502, %v1504
    %v1506 = vrot.slane %v1498, %v1505
    %v1508 = vunpack.c.l.s4 1966171168
    %v1509 = vunpack.c.0.s8 %v1508
    %v1510 = vlaneseq
    %v1511 = vshrl.u32 %v1510, 7
    %v1512 = vsub.s32 %v1509, %v1511
    %v1513 = vrot.slane %v1499, %v1512
    %v1514 = vcombine.low %v1506, %v1513
    %1515 = vset.pattern.permute.xlu0 0
    %1516 = vperm.xlu0 %1515, %v779
    %v1517 = vpop.permute.xlu0 %1516
    %1518 = vset.pattern.permute.xlu0 0
    %1519 = vperm.xlu0 %1518, %v828
    %v1520 = vpop.permute.xlu0 %1519
    %1521 = vset.pattern.permute.xlu0 0
    %1522 = vperm.xlu0 %1521, %v877
    %v1523 = vpop.permute.xlu0 %1522
    %1524 = vset.pattern.permute.xlu0 0
    %1525 = vperm.xlu0 %1524, %v926
    %v1526 = vpop.permute.xlu0 %1525
    %1527 = vset.pattern.permute.xlu0 0
    %1528 = vperm.xlu0 %1527, %v975
    %v1529 = vpop.permute.xlu0 %1528
    %1530 = vset.pattern.permute.xlu0 0
    %1531 = vperm.xlu0 %1530, %v1024
    %v1532 = vpop.permute.xlu0 %1531
    %1533 = vset.pattern.permute.xlu0 0
    %1534 = vperm.xlu0 %1533, %v1073
    %v1535 = vpop.permute.xlu0 %1534
    %1536 = vset.pattern.permute.xlu0 0
    %1537 = vperm.xlu0 %1536, %v1122
    %v1538 = vpop.permute.xlu0 %1537
    %1539 = vset.pattern.permute.xlu0 0
    %1540 = vperm.xlu0 %1539, %v1171
    %v1541 = vpop.permute.xlu0 %1540
    %1542 = vset.pattern.permute.xlu0 0
    %1543 = vperm.xlu0 %1542, %v1220
    %v1544 = vpop.permute.xlu0 %1543
    %1545 = vset.pattern.permute.xlu0 0
    %1546 = vperm.xlu0 %1545, %v1269
    %v1547 = vpop.permute.xlu0 %1546
    %1548 = vset.pattern.permute.xlu0 0
    %1549 = vperm.xlu0 %1548, %v1318
    %v1550 = vpop.permute.xlu0 %1549
    %1551 = vset.pattern.permute.xlu0 0
    %1552 = vperm.xlu0 %1551, %v1367
    %v1553 = vpop.permute.xlu0 %1552
    %1554 = vset.pattern.permute.xlu0 0
    %1555 = vperm.xlu0 %1554, %v1416
    %v1556 = vpop.permute.xlu0 %1555
    %1557 = vset.pattern.permute.xlu0 0
    %1558 = vperm.xlu0 %1557, %v1465
    %v1559 = vpop.permute.xlu0 %1558
    %1560 = vset.pattern.permute.xlu0 0
    %1561 = vperm.xlu0 %1560, %v1514
    %v1562 = vpop.permute.xlu0 %1561
    %v1563 = vlaneseq
    %v1564 = vand.u32 %v1563, 127
    %v1565 = vlaneseq
    %v1566 = vshrl.u32 %v1565, 7
    %v1567 = vsub.s32 %v1564, %v1566
    %v1568 = vrot.slane %v1517, %v1567
    %v1569 = vadd.s32 %v1564, 4294967288
    %v1570 = vlaneseq
    %v1571 = vshrl.u32 %v1570, 7
    %v1572 = vsub.s32 %v1569, %v1571
    %v1573 = vrot.slane %v1520, %v1572
    %vm1574 = vcmask 130112
    %v1575 = vsel %vm1574, %v1573, %v1568
    %v1576 = vadd.s32 %v1564, 4294967280
    %v1577 = vlaneseq
    %v1578 = vshrl.u32 %v1577, 7
    %v1579 = vsub.s32 %v1576, %v1578
    %v1580 = vrot.slane %v1523, %v1579
    %vm1581 = vcmask 195712
    %v1582 = vsel %vm1581, %v1580, %v1575
    %v1583 = vadd.s32 %v1564, 4294967272
    %v1584 = vlaneseq
    %v1585 = vshrl.u32 %v1584, 7
    %v1586 = vsub.s32 %v1583, %v1585
    %v1587 = vrot.slane %v1526, %v1586
    %vm1588 = vcmask 261312
    %v1589 = vsel %vm1588, %v1587, %v1582
    %v1590 = vadd.s32 %v1564, 4294967264
    %v1591 = vlaneseq
    %v1592 = vshrl.u32 %v1591, 7
    %v1593 = vsub.s32 %v1590, %v1592
    %v1594 = vrot.slane %v1529, %v1593
    %vm1595 = vcmask 326912
    %v1596 = vsel %vm1595, %v1594, %v1589
    %v1597 = vadd.s32 %v1564, 4294967256
    %v1598 = vlaneseq
    %v1599 = vshrl.u32 %v1598, 7
    %v1600 = vsub.s32 %v1597, %v1599
    %v1601 = vrot.slane %v1532, %v1600
    %vm1602 = vcmask 392512
    %v1603 = vsel %vm1602, %v1601, %v1596
    %v1604 = vadd.s32 %v1564, 4294967248
    %v1605 = vlaneseq
    %v1606 = vshrl.u32 %v1605, 7
    %v1607 = vsub.s32 %v1604, %v1606
    %v1608 = vrot.slane %v1535, %v1607
    %vm1609 = vcmask 458112
    %v1610 = vsel %vm1609, %v1608, %v1603
    %v1611 = vadd.s32 %v1564, 4294967240
    %v1612 = vlaneseq
    %v1613 = vshrl.u32 %v1612, 7
    %v1614 = vsub.s32 %v1611, %v1613
    %v1615 = vrot.slane %v1538, %v1614
    %vm1616 = vcmask 523712
    %v1617 = vsel %vm1616, %v1615, %v1610
    %v1618 = vadd.s32 %v1564, 4294967232
    %v1619 = vlaneseq
    %v1620 = vshrl.u32 %v1619, 7
    %v1621 = vsub.s32 %v1618, %v1620
    %v1622 = vrot.slane %v1541, %v1621
    %vm1623 = vcmask 589312
    %v1624 = vsel %vm1623, %v1622, %v1617
    %v1625 = vadd.s32 %v1564, 4294967224
    %v1626 = vlaneseq
    %v1627 = vshrl.u32 %v1626, 7
    %v1628 = vsub.s32 %v1625, %v1627
    %v1629 = vrot.slane %v1544, %v1628
    %vm1630 = vcmask 654912
    %v1631 = vsel %vm1630, %v1629, %v1624
    %v1632 = vadd.s32 %v1564, 4294967216
    %v1633 = vlaneseq
    %v1634 = vshrl.u32 %v1633, 7
    %v1635 = vsub.s32 %v1632, %v1634
    %v1636 = vrot.slane %v1547, %v1635
    %vm1637 = vcmask 720512
    %v1638 = vsel %vm1637, %v1636, %v1631
    %v1639 = vadd.s32 %v1564, 4294967208
    %v1640 = vlaneseq
    %v1641 = vshrl.u32 %v1640, 7
    %v1642 = vsub.s32 %v1639, %v1641
    %v1643 = vrot.slane %v1550, %v1642
    %vm1644 = vcmask 786112
    %v1645 = vsel %vm1644, %v1643, %v1638
    %v1646 = vadd.s32 %v1564, 4294967200
    %v1647 = vlaneseq
    %v1648 = vshrl.u32 %v1647, 7
    %v1649 = vsub.s32 %v1646, %v1648
    %v1650 = vrot.slane %v1553, %v1649
    %vm1651 = vcmask 851712
    %v1652 = vsel %vm1651, %v1650, %v1645
    %v1653 = vadd.s32 %v1564, 4294967192
    %v1654 = vlaneseq
    %v1655 = vshrl.u32 %v1654, 7
    %v1656 = vsub.s32 %v1653, %v1655
    %v1657 = vrot.slane %v1556, %v1656
    %vm1658 = vcmask 917312
    %v1659 = vsel %vm1658, %v1657, %v1652
    %v1660 = vadd.s32 %v1564, 4294967184
    %v1661 = vlaneseq
    %v1662 = vshrl.u32 %v1661, 7
    %v1663 = vsub.s32 %v1660, %v1662
    %v1664 = vrot.slane %v1559, %v1663
    %vm1665 = vcmask 982912
    %v1666 = vsel %vm1665, %v1664, %v1659
    %v1667 = vadd.s32 %v1564, 4294967176
    %v1668 = vlaneseq
    %v1669 = vshrl.u32 %v1668, 7
    %v1670 = vsub.s32 %v1667, %v1669
    %v1671 = vrot.slane %v1562, %v1670
    %vm1672 = vcmask 1048512
    %v1673 = vsel %vm1672, %v1671, %v1666
    %v1675 = vunpack.c.l.s4 1966171168
    %v1676 = vunpack.c.0.s8 %v1675
    %v1677 = vlaneseq
    %v1678 = vshrl.u32 %v1677, 7
    %v1679 = vsub.s32 %v1676, %v1678
    %v1680 = vrot.slane %v1673, %v1679
    %v1682 = vunpack.c.l.s4 1966171168
    %v1683 = vunpack.c.0.s8 %v1682
    %v1684 = vlaneseq
    %v1685 = vshrl.u32 %v1684, 7
    %v1686 = vsub.s32 %v1683, %v1685
    %v1687 = vrot.slane %v1680, %v1686
    %v1689 = vadd.f32 %v202, %v1687
    %1690 = vst [vmem:[#allocation2] sm:$0x1] %v1689
    %v1691 = vld [vmem:[#allocation3] sm:$0x1]
    %v1708 = vlaneseq
    %v1709 = vshrl.u32 %v1708, 7
    %v1710 = vsub.s32 0, %v1709
    %v1711 = vrot.slane %v156, %v1710
    %v1712 = vlaneseq
    %v1713 = vshrl.u32 %v1712, 7
    %v1714 = vsub.s32 1, %v1713
    %v1715 = vrot.slane %v156, %v1714
    %v1716 = vlaneseq
    %v1717 = vshrl.u32 %v1716, 7
    %v1718 = vsub.s32 2, %v1717
    %v1719 = vrot.slane %v156, %v1718
    %v1720 = vlaneseq
    %v1721 = vshrl.u32 %v1720, 7
    %v1722 = vsub.s32 3, %v1721
    %v1723 = vrot.slane %v156, %v1722
    %v1724 = vlaneseq
    %v1725 = vshrl.u32 %v1724, 7
    %v1726 = vsub.s32 4, %v1725
    %v1727 = vrot.slane %v156, %v1726
    %v1728 = vlaneseq
    %v1729 = vshrl.u32 %v1728, 7
    %v1730 = vsub.s32 5, %v1729
    %v1731 = vrot.slane %v156, %v1730
    %v1732 = vlaneseq
    %v1733 = vshrl.u32 %v1732, 7
    %v1734 = vsub.s32 6, %v1733
    %v1735 = vrot.slane %v156, %v1734
    %v1736 = vlaneseq
    %v1737 = vshrl.u32 %v1736, 7
    %v1738 = vsub.s32 7, %v1737
    %v1739 = vrot.slane %v156, %v1738
    %v1740 = vlaneseq
    %v1741 = vshrl.u32 %v1740, 7
    %v1742 = vsub.s32 0, %v1741
    %v1743 = vrot.slane %v159, %v1742
    %v1744 = vlaneseq
    %v1745 = vshrl.u32 %v1744, 7
    %v1746 = vsub.s32 1, %v1745
    %v1747 = vrot.slane %v159, %v1746
    %v1748 = vlaneseq
    %v1749 = vshrl.u32 %v1748, 7
    %v1750 = vsub.s32 2, %v1749
    %v1751 = vrot.slane %v159, %v1750
    %v1752 = vlaneseq
    %v1753 = vshrl.u32 %v1752, 7
    %v1754 = vsub.s32 3, %v1753
    %v1755 = vrot.slane %v159, %v1754
    %v1756 = vlaneseq
    %v1757 = vshrl.u32 %v1756, 7
    %v1758 = vsub.s32 4, %v1757
    %v1759 = vrot.slane %v159, %v1758
    %v1760 = vlaneseq
    %v1761 = vshrl.u32 %v1760, 7
    %v1762 = vsub.s32 5, %v1761
    %v1763 = vrot.slane %v159, %v1762
    %v1764 = vlaneseq
    %v1765 = vshrl.u32 %v1764, 7
    %v1766 = vsub.s32 6, %v1765
    %v1767 = vrot.slane %v159, %v1766
    %v1768 = vlaneseq
    %v1769 = vshrl.u32 %v1768, 7
    %v1770 = vsub.s32 7, %v1769
    %v1771 = vrot.slane %v159, %v1770
    %v1772 = vlaneseq
    %v1773 = vshrl.u32 %v1772, 7
    %v1774 = vsub.s32 0, %v1773
    %v1775 = vrot.slane %v162, %v1774
    %v1776 = vlaneseq
    %v1777 = vshrl.u32 %v1776, 7
    %v1778 = vsub.s32 1, %v1777
    %v1779 = vrot.slane %v162, %v1778
    %v1780 = vlaneseq
    %v1781 = vshrl.u32 %v1780, 7
    %v1782 = vsub.s32 2, %v1781
    %v1783 = vrot.slane %v162, %v1782
    %v1784 = vlaneseq
    %v1785 = vshrl.u32 %v1784, 7
    %v1786 = vsub.s32 3, %v1785
    %v1787 = vrot.slane %v162, %v1786
    %v1788 = vlaneseq
    %v1789 = vshrl.u32 %v1788, 7
    %v1790 = vsub.s32 4, %v1789
    %v1791 = vrot.slane %v162, %v1790
    %v1792 = vlaneseq
    %v1793 = vshrl.u32 %v1792, 7
    %v1794 = vsub.s32 5, %v1793
    %v1795 = vrot.slane %v162, %v1794
    %v1796 = vlaneseq
    %v1797 = vshrl.u32 %v1796, 7
    %v1798 = vsub.s32 6, %v1797
    %v1799 = vrot.slane %v162, %v1798
    %v1800 = vlaneseq
    %v1801 = vshrl.u32 %v1800, 7
    %v1802 = vsub.s32 7, %v1801
    %v1803 = vrot.slane %v162, %v1802
    %v1804 = vlaneseq
    %v1805 = vshrl.u32 %v1804, 7
    %v1806 = vsub.s32 0, %v1805
    %v1807 = vrot.slane %v165, %v1806
    %v1808 = vlaneseq
    %v1809 = vshrl.u32 %v1808, 7
    %v1810 = vsub.s32 1, %v1809
    %v1811 = vrot.slane %v165, %v1810
    %v1812 = vlaneseq
    %v1813 = vshrl.u32 %v1812, 7
    %v1814 = vsub.s32 2, %v1813
    %v1815 = vrot.slane %v165, %v1814
    %v1816 = vlaneseq
    %v1817 = vshrl.u32 %v1816, 7
    %v1818 = vsub.s32 3, %v1817
    %v1819 = vrot.slane %v165, %v1818
    %v1820 = vlaneseq
    %v1821 = vshrl.u32 %v1820, 7
    %v1822 = vsub.s32 4, %v1821
    %v1823 = vrot.slane %v165, %v1822
    %v1824 = vlaneseq
    %v1825 = vshrl.u32 %v1824, 7
    %v1826 = vsub.s32 5, %v1825
    %v1827 = vrot.slane %v165, %v1826
    %v1828 = vlaneseq
    %v1829 = vshrl.u32 %v1828, 7
    %v1830 = vsub.s32 6, %v1829
    %v1831 = vrot.slane %v165, %v1830
    %v1832 = vlaneseq
    %v1833 = vshrl.u32 %v1832, 7
    %v1834 = vsub.s32 7, %v1833
    %v1835 = vrot.slane %v165, %v1834
    %v1836 = vlaneseq
    %v1837 = vshrl.u32 %v1836, 7
    %v1838 = vsub.s32 0, %v1837
    %v1839 = vrot.slane %v168, %v1838
    %v1840 = vlaneseq
    %v1841 = vshrl.u32 %v1840, 7
    %v1842 = vsub.s32 1, %v1841
    %v1843 = vrot.slane %v168, %v1842
    %v1844 = vlaneseq
    %v1845 = vshrl.u32 %v1844, 7
    %v1846 = vsub.s32 2, %v1845
    %v1847 = vrot.slane %v168, %v1846
    %v1848 = vlaneseq
    %v1849 = vshrl.u32 %v1848, 7
    %v1850 = vsub.s32 3, %v1849
    %v1851 = vrot.slane %v168, %v1850
    %v1852 = vlaneseq
    %v1853 = vshrl.u32 %v1852, 7
    %v1854 = vsub.s32 4, %v1853
    %v1855 = vrot.slane %v168, %v1854
    %v1856 = vlaneseq
    %v1857 = vshrl.u32 %v1856, 7
    %v1858 = vsub.s32 5, %v1857
    %v1859 = vrot.slane %v168, %v1858
    %v1860 = vlaneseq
    %v1861 = vshrl.u32 %v1860, 7
    %v1862 = vsub.s32 6, %v1861
    %v1863 = vrot.slane %v168, %v1862
    %v1864 = vlaneseq
    %v1865 = vshrl.u32 %v1864, 7
    %v1866 = vsub.s32 7, %v1865
    %v1867 = vrot.slane %v168, %v1866
    %v1868 = vlaneseq
    %v1869 = vshrl.u32 %v1868, 7
    %v1870 = vsub.s32 0, %v1869
    %v1871 = vrot.slane %v171, %v1870
    %v1872 = vlaneseq
    %v1873 = vshrl.u32 %v1872, 7
    %v1874 = vsub.s32 1, %v1873
    %v1875 = vrot.slane %v171, %v1874
    %v1876 = vlaneseq
    %v1877 = vshrl.u32 %v1876, 7
    %v1878 = vsub.s32 2, %v1877
    %v1879 = vrot.slane %v171, %v1878
    %v1880 = vlaneseq
    %v1881 = vshrl.u32 %v1880, 7
    %v1882 = vsub.s32 3, %v1881
    %v1883 = vrot.slane %v171, %v1882
    %v1884 = vlaneseq
    %v1885 = vshrl.u32 %v1884, 7
    %v1886 = vsub.s32 4, %v1885
    %v1887 = vrot.slane %v171, %v1886
    %v1888 = vlaneseq
    %v1889 = vshrl.u32 %v1888, 7
    %v1890 = vsub.s32 5, %v1889
    %v1891 = vrot.slane %v171, %v1890
    %v1892 = vlaneseq
    %v1893 = vshrl.u32 %v1892, 7
    %v1894 = vsub.s32 6, %v1893
    %v1895 = vrot.slane %v171, %v1894
    %v1896 = vlaneseq
    %v1897 = vshrl.u32 %v1896, 7
    %v1898 = vsub.s32 7, %v1897
    %v1899 = vrot.slane %v171, %v1898
    %v1900 = vlaneseq
    %v1901 = vshrl.u32 %v1900, 7
    %v1902 = vsub.s32 0, %v1901
    %v1903 = vrot.slane %v174, %v1902
    %v1904 = vlaneseq
    %v1905 = vshrl.u32 %v1904, 7
    %v1906 = vsub.s32 1, %v1905
    %v1907 = vrot.slane %v174, %v1906
    %v1908 = vlaneseq
    %v1909 = vshrl.u32 %v1908, 7
    %v1910 = vsub.s32 2, %v1909
    %v1911 = vrot.slane %v174, %v1910
    %v1912 = vlaneseq
    %v1913 = vshrl.u32 %v1912, 7
    %v1914 = vsub.s32 3, %v1913
    %v1915 = vrot.slane %v174, %v1914
    %v1916 = vlaneseq
    %v1917 = vshrl.u32 %v1916, 7
    %v1918 = vsub.s32 4, %v1917
    %v1919 = vrot.slane %v174, %v1918
    %v1920 = vlaneseq
    %v1921 = vshrl.u32 %v1920, 7
    %v1922 = vsub.s32 5, %v1921
    %v1923 = vrot.slane %v174, %v1922
    %v1924 = vlaneseq
    %v1925 = vshrl.u32 %v1924, 7
    %v1926 = vsub.s32 6, %v1925
    %v1927 = vrot.slane %v174, %v1926
    %v1928 = vlaneseq
    %v1929 = vshrl.u32 %v1928, 7
    %v1930 = vsub.s32 7, %v1929
    %v1931 = vrot.slane %v174, %v1930
    %v1932 = vlaneseq
    %v1933 = vshrl.u32 %v1932, 7
    %v1934 = vsub.s32 0, %v1933
    %v1935 = vrot.slane %v177, %v1934
    %v1936 = vlaneseq
    %v1937 = vshrl.u32 %v1936, 7
    %v1938 = vsub.s32 1, %v1937
    %v1939 = vrot.slane %v177, %v1938
    %v1940 = vlaneseq
    %v1941 = vshrl.u32 %v1940, 7
    %v1942 = vsub.s32 2, %v1941
    %v1943 = vrot.slane %v177, %v1942
    %v1944 = vlaneseq
    %v1945 = vshrl.u32 %v1944, 7
    %v1946 = vsub.s32 3, %v1945
    %v1947 = vrot.slane %v177, %v1946
    %v1948 = vlaneseq
    %v1949 = vshrl.u32 %v1948, 7
    %v1950 = vsub.s32 4, %v1949
    %v1951 = vrot.slane %v177, %v1950
    %v1952 = vlaneseq
    %v1953 = vshrl.u32 %v1952, 7
    %v1954 = vsub.s32 5, %v1953
    %v1955 = vrot.slane %v177, %v1954
    %v1956 = vlaneseq
    %v1957 = vshrl.u32 %v1956, 7
    %v1958 = vsub.s32 6, %v1957
    %v1959 = vrot.slane %v177, %v1958
    %v1960 = vlaneseq
    %v1961 = vshrl.u32 %v1960, 7
    %v1962 = vsub.s32 7, %v1961
    %v1963 = vrot.slane %v177, %v1962
    %v1964 = vlaneseq
    %v1965 = vshrl.u32 %v1964, 7
    %v1966 = vsub.s32 0, %v1965
    %v1967 = vrot.slane %v180, %v1966
    %v1968 = vlaneseq
    %v1969 = vshrl.u32 %v1968, 7
    %v1970 = vsub.s32 1, %v1969
    %v1971 = vrot.slane %v180, %v1970
    %v1972 = vlaneseq
    %v1973 = vshrl.u32 %v1972, 7
    %v1974 = vsub.s32 2, %v1973
    %v1975 = vrot.slane %v180, %v1974
    %v1976 = vlaneseq
    %v1977 = vshrl.u32 %v1976, 7
    %v1978 = vsub.s32 3, %v1977
    %v1979 = vrot.slane %v180, %v1978
    %v1980 = vlaneseq
    %v1981 = vshrl.u32 %v1980, 7
    %v1982 = vsub.s32 4, %v1981
    %v1983 = vrot.slane %v180, %v1982
    %v1984 = vlaneseq
    %v1985 = vshrl.u32 %v1984, 7
    %v1986 = vsub.s32 5, %v1985
    %v1987 = vrot.slane %v180, %v1986
    %v1988 = vlaneseq
    %v1989 = vshrl.u32 %v1988, 7
    %v1990 = vsub.s32 6, %v1989
    %v1991 = vrot.slane %v180, %v1990
    %v1992 = vlaneseq
    %v1993 = vshrl.u32 %v1992, 7
    %v1994 = vsub.s32 7, %v1993
    %v1995 = vrot.slane %v180, %v1994
    %v1996 = vlaneseq
    %v1997 = vshrl.u32 %v1996, 7
    %v1998 = vsub.s32 0, %v1997
    %v1999 = vrot.slane %v183, %v1998
    %v2000 = vlaneseq
    %v2001 = vshrl.u32 %v2000, 7
    %v2002 = vsub.s32 1, %v2001
    %v2003 = vrot.slane %v183, %v2002
    %v2004 = vlaneseq
    %v2005 = vshrl.u32 %v2004, 7
    %v2006 = vsub.s32 2, %v2005
    %v2007 = vrot.slane %v183, %v2006
    %v2008 = vlaneseq
    %v2009 = vshrl.u32 %v2008, 7
    %v2010 = vsub.s32 3, %v2009
    %v2011 = vrot.slane %v183, %v2010
    %v2012 = vlaneseq
    %v2013 = vshrl.u32 %v2012, 7
    %v2014 = vsub.s32 4, %v2013
    %v2015 = vrot.slane %v183, %v2014
    %v2016 = vlaneseq
    %v2017 = vshrl.u32 %v2016, 7
    %v2018 = vsub.s32 5, %v2017
    %v2019 = vrot.slane %v183, %v2018
    %v2020 = vlaneseq
    %v2021 = vshrl.u32 %v2020, 7
    %v2022 = vsub.s32 6, %v2021
    %v2023 = vrot.slane %v183, %v2022
    %v2024 = vlaneseq
    %v2025 = vshrl.u32 %v2024, 7
    %v2026 = vsub.s32 7, %v2025
    %v2027 = vrot.slane %v183, %v2026
    %v2028 = vlaneseq
    %v2029 = vshrl.u32 %v2028, 7
    %v2030 = vsub.s32 0, %v2029
    %v2031 = vrot.slane %v186, %v2030
    %v2032 = vlaneseq
    %v2033 = vshrl.u32 %v2032, 7
    %v2034 = vsub.s32 1, %v2033
    %v2035 = vrot.slane %v186, %v2034
    %v2036 = vlaneseq
    %v2037 = vshrl.u32 %v2036, 7
    %v2038 = vsub.s32 2, %v2037
    %v2039 = vrot.slane %v186, %v2038
    %v2040 = vlaneseq
    %v2041 = vshrl.u32 %v2040, 7
    %v2042 = vsub.s32 3, %v2041
    %v2043 = vrot.slane %v186, %v2042
    %v2044 = vlaneseq
    %v2045 = vshrl.u32 %v2044, 7
    %v2046 = vsub.s32 4, %v2045
    %v2047 = vrot.slane %v186, %v2046
    %v2048 = vlaneseq
    %v2049 = vshrl.u32 %v2048, 7
    %v2050 = vsub.s32 5, %v2049
    %v2051 = vrot.slane %v186, %v2050
    %v2052 = vlaneseq
    %v2053 = vshrl.u32 %v2052, 7
    %v2054 = vsub.s32 6, %v2053
    %v2055 = vrot.slane %v186, %v2054
    %v2056 = vlaneseq
    %v2057 = vshrl.u32 %v2056, 7
    %v2058 = vsub.s32 7, %v2057
    %v2059 = vrot.slane %v186, %v2058
    %v2060 = vlaneseq
    %v2061 = vshrl.u32 %v2060, 7
    %v2062 = vsub.s32 0, %v2061
    %v2063 = vrot.slane %v189, %v2062
    %v2064 = vlaneseq
    %v2065 = vshrl.u32 %v2064, 7
    %v2066 = vsub.s32 1, %v2065
    %v2067 = vrot.slane %v189, %v2066
    %v2068 = vlaneseq
    %v2069 = vshrl.u32 %v2068, 7
    %v2070 = vsub.s32 2, %v2069
    %v2071 = vrot.slane %v189, %v2070
    %v2072 = vlaneseq
    %v2073 = vshrl.u32 %v2072, 7
    %v2074 = vsub.s32 3, %v2073
    %v2075 = vrot.slane %v189, %v2074
    %v2076 = vlaneseq
    %v2077 = vshrl.u32 %v2076, 7
    %v2078 = vsub.s32 4, %v2077
    %v2079 = vrot.slane %v189, %v2078
    %v2080 = vlaneseq
    %v2081 = vshrl.u32 %v2080, 7
    %v2082 = vsub.s32 5, %v2081
    %v2083 = vrot.slane %v189, %v2082
    %v2084 = vlaneseq
    %v2085 = vshrl.u32 %v2084, 7
    %v2086 = vsub.s32 6, %v2085
    %v2087 = vrot.slane %v189, %v2086
    %v2088 = vlaneseq
    %v2089 = vshrl.u32 %v2088, 7
    %v2090 = vsub.s32 7, %v2089
    %v2091 = vrot.slane %v189, %v2090
    %v2092 = vlaneseq
    %v2093 = vshrl.u32 %v2092, 7
    %v2094 = vsub.s32 0, %v2093
    %v2095 = vrot.slane %v192, %v2094
    %v2096 = vlaneseq
    %v2097 = vshrl.u32 %v2096, 7
    %v2098 = vsub.s32 1, %v2097
    %v2099 = vrot.slane %v192, %v2098
    %v2100 = vlaneseq
    %v2101 = vshrl.u32 %v2100, 7
    %v2102 = vsub.s32 2, %v2101
    %v2103 = vrot.slane %v192, %v2102
    %v2104 = vlaneseq
    %v2105 = vshrl.u32 %v2104, 7
    %v2106 = vsub.s32 3, %v2105
    %v2107 = vrot.slane %v192, %v2106
    %v2108 = vlaneseq
    %v2109 = vshrl.u32 %v2108, 7
    %v2110 = vsub.s32 4, %v2109
    %v2111 = vrot.slane %v192, %v2110
    %v2112 = vlaneseq
    %v2113 = vshrl.u32 %v2112, 7
    %v2114 = vsub.s32 5, %v2113
    %v2115 = vrot.slane %v192, %v2114
    %v2116 = vlaneseq
    %v2117 = vshrl.u32 %v2116, 7
    %v2118 = vsub.s32 6, %v2117
    %v2119 = vrot.slane %v192, %v2118
    %v2120 = vlaneseq
    %v2121 = vshrl.u32 %v2120, 7
    %v2122 = vsub.s32 7, %v2121
    %v2123 = vrot.slane %v192, %v2122
    %v2124 = vlaneseq
    %v2125 = vshrl.u32 %v2124, 7
    %v2126 = vsub.s32 0, %v2125
    %v2127 = vrot.slane %v195, %v2126
    %v2128 = vlaneseq
    %v2129 = vshrl.u32 %v2128, 7
    %v2130 = vsub.s32 1, %v2129
    %v2131 = vrot.slane %v195, %v2130
    %v2132 = vlaneseq
    %v2133 = vshrl.u32 %v2132, 7
    %v2134 = vsub.s32 2, %v2133
    %v2135 = vrot.slane %v195, %v2134
    %v2136 = vlaneseq
    %v2137 = vshrl.u32 %v2136, 7
    %v2138 = vsub.s32 3, %v2137
    %v2139 = vrot.slane %v195, %v2138
    %v2140 = vlaneseq
    %v2141 = vshrl.u32 %v2140, 7
    %v2142 = vsub.s32 4, %v2141
    %v2143 = vrot.slane %v195, %v2142
    %v2144 = vlaneseq
    %v2145 = vshrl.u32 %v2144, 7
    %v2146 = vsub.s32 5, %v2145
    %v2147 = vrot.slane %v195, %v2146
    %v2148 = vlaneseq
    %v2149 = vshrl.u32 %v2148, 7
    %v2150 = vsub.s32 6, %v2149
    %v2151 = vrot.slane %v195, %v2150
    %v2152 = vlaneseq
    %v2153 = vshrl.u32 %v2152, 7
    %v2154 = vsub.s32 7, %v2153
    %v2155 = vrot.slane %v195, %v2154
    %v2156 = vlaneseq
    %v2157 = vshrl.u32 %v2156, 7
    %v2158 = vsub.s32 0, %v2157
    %v2159 = vrot.slane %v198, %v2158
    %v2160 = vlaneseq
    %v2161 = vshrl.u32 %v2160, 7
    %v2162 = vsub.s32 1, %v2161
    %v2163 = vrot.slane %v198, %v2162
    %v2164 = vlaneseq
    %v2165 = vshrl.u32 %v2164, 7
    %v2166 = vsub.s32 2, %v2165
    %v2167 = vrot.slane %v198, %v2166
    %v2168 = vlaneseq
    %v2169 = vshrl.u32 %v2168, 7
    %v2170 = vsub.s32 3, %v2169
    %v2171 = vrot.slane %v198, %v2170
    %v2172 = vlaneseq
    %v2173 = vshrl.u32 %v2172, 7
    %v2174 = vsub.s32 4, %v2173
    %v2175 = vrot.slane %v198, %v2174
    %v2176 = vlaneseq
    %v2177 = vshrl.u32 %v2176, 7
    %v2178 = vsub.s32 5, %v2177
    %v2179 = vrot.slane %v198, %v2178
    %v2180 = vlaneseq
    %v2181 = vshrl.u32 %v2180, 7
    %v2182 = vsub.s32 6, %v2181
    %v2183 = vrot.slane %v198, %v2182
    %v2184 = vlaneseq
    %v2185 = vshrl.u32 %v2184, 7
    %v2186 = vsub.s32 7, %v2185
    %v2187 = vrot.slane %v198, %v2186
    %v2188 = vlaneseq
    %v2189 = vshrl.u32 %v2188, 7
    %v2190 = vsub.s32 0, %v2189
    %v2191 = vrot.slane %v201, %v2190
    %v2192 = vlaneseq
    %v2193 = vshrl.u32 %v2192, 7
    %v2194 = vsub.s32 1, %v2193
    %v2195 = vrot.slane %v201, %v2194
    %v2196 = vlaneseq
    %v2197 = vshrl.u32 %v2196, 7
    %v2198 = vsub.s32 2, %v2197
    %v2199 = vrot.slane %v201, %v2198
    %v2200 = vlaneseq
    %v2201 = vshrl.u32 %v2200, 7
    %v2202 = vsub.s32 3, %v2201
    %v2203 = vrot.slane %v201, %v2202
    %v2204 = vlaneseq
    %v2205 = vshrl.u32 %v2204, 7
    %v2206 = vsub.s32 4, %v2205
    %v2207 = vrot.slane %v201, %v2206
    %v2208 = vlaneseq
    %v2209 = vshrl.u32 %v2208, 7
    %v2210 = vsub.s32 5, %v2209
    %v2211 = vrot.slane %v201, %v2210
    %v2212 = vlaneseq
    %v2213 = vshrl.u32 %v2212, 7
    %v2214 = vsub.s32 6, %v2213
    %v2215 = vrot.slane %v201, %v2214
    %v2216 = vlaneseq
    %v2217 = vshrl.u32 %v2216, 7
    %v2218 = vsub.s32 7, %v2217
    %v2219 = vrot.slane %v201, %v2218
    %v2220 = vcombine.low %v1711, %v1715
    %v2221 = vcombine.low %v1719, %v1723
    %v2222 = vcombine.low %v1727, %v1731
    %v2223 = vcombine.low %v1735, %v1739
    %v2225 = vunpack.c.l.s4 1966171168
    %v2226 = vunpack.c.0.s8 %v2225
    %v2227 = vlaneseq
    %v2228 = vshrl.u32 %v2227, 7
    %v2229 = vsub.s32 %v2226, %v2228
    %v2230 = vrot.slane %v2220, %v2229
    %v2232 = vunpack.c.l.s4 1966171168
    %v2233 = vunpack.c.0.s8 %v2232
    %v2234 = vlaneseq
    %v2235 = vshrl.u32 %v2234, 7
    %v2236 = vsub.s32 %v2233, %v2235
    %v2237 = vrot.slane %v2221, %v2236
    %v2239 = vunpack.c.l.s4 1966171168
    %v2240 = vunpack.c.0.s8 %v2239
    %v2241 = vlaneseq
    %v2242 = vshrl.u32 %v2241, 7
    %v2243 = vsub.s32 %v2240, %v2242
    %v2244 = vrot.slane %v2222, %v2243
    %v2246 = vunpack.c.l.s4 1966171168
    %v2247 = vunpack.c.0.s8 %v2246
    %v2248 = vlaneseq
    %v2249 = vshrl.u32 %v2248, 7
    %v2250 = vsub.s32 %v2247, %v2249
    %v2251 = vrot.slane %v2223, %v2250
    %v2252 = vcombine.low %v2230, %v2237
    %v2253 = vcombine.low %v2244, %v2251
    %v2255 = vunpack.c.l.s4 1966171168
    %v2256 = vunpack.c.0.s8 %v2255
    %v2257 = vlaneseq
    %v2258 = vshrl.u32 %v2257, 7
    %v2259 = vsub.s32 %v2256, %v2258
    %v2260 = vrot.slane %v2252, %v2259
    %v2262 = vunpack.c.l.s4 1966171168
    %v2263 = vunpack.c.0.s8 %v2262
    %v2264 = vlaneseq
    %v2265 = vshrl.u32 %v2264, 7
    %v2266 = vsub.s32 %v2263, %v2265
    %v2267 = vrot.slane %v2253, %v2266
    %v2268 = vcombine.low %v2260, %v2267
    %v2269 = vcombine.low %v1743, %v1747
    %v2270 = vcombine.low %v1751, %v1755
    %v2271 = vcombine.low %v1759, %v1763
    %v2272 = vcombine.low %v1767, %v1771
    %v2274 = vunpack.c.l.s4 1966171168
    %v2275 = vunpack.c.0.s8 %v2274
    %v2276 = vlaneseq
    %v2277 = vshrl.u32 %v2276, 7
    %v2278 = vsub.s32 %v2275, %v2277
    %v2279 = vrot.slane %v2269, %v2278
    %v2281 = vunpack.c.l.s4 1966171168
    %v2282 = vunpack.c.0.s8 %v2281
    %v2283 = vlaneseq
    %v2284 = vshrl.u32 %v2283, 7
    %v2285 = vsub.s32 %v2282, %v2284
    %v2286 = vrot.slane %v2270, %v2285
    %v2288 = vunpack.c.l.s4 1966171168
    %v2289 = vunpack.c.0.s8 %v2288
    %v2290 = vlaneseq
    %v2291 = vshrl.u32 %v2290, 7
    %v2292 = vsub.s32 %v2289, %v2291
    %v2293 = vrot.slane %v2271, %v2292
    %v2295 = vunpack.c.l.s4 1966171168
    %v2296 = vunpack.c.0.s8 %v2295
    %v2297 = vlaneseq
    %v2298 = vshrl.u32 %v2297, 7
    %v2299 = vsub.s32 %v2296, %v2298
    %v2300 = vrot.slane %v2272, %v2299
    %v2301 = vcombine.low %v2279, %v2286
    %v2302 = vcombine.low %v2293, %v2300
    %v2304 = vunpack.c.l.s4 1966171168
    %v2305 = vunpack.c.0.s8 %v2304
    %v2306 = vlaneseq
    %v2307 = vshrl.u32 %v2306, 7
    %v2308 = vsub.s32 %v2305, %v2307
    %v2309 = vrot.slane %v2301, %v2308
    %v2311 = vunpack.c.l.s4 1966171168
    %v2312 = vunpack.c.0.s8 %v2311
    %v2313 = vlaneseq
    %v2314 = vshrl.u32 %v2313, 7
    %v2315 = vsub.s32 %v2312, %v2314
    %v2316 = vrot.slane %v2302, %v2315
    %v2317 = vcombine.low %v2309, %v2316
    %v2318 = vcombine.low %v1775, %v1779
    %v2319 = vcombine.low %v1783, %v1787
    %v2320 = vcombine.low %v1791, %v1795
    %v2321 = vcombine.low %v1799, %v1803
    %v2323 = vunpack.c.l.s4 1966171168
    %v2324 = vunpack.c.0.s8 %v2323
    %v2325 = vlaneseq
    %v2326 = vshrl.u32 %v2325, 7
    %v2327 = vsub.s32 %v2324, %v2326
    %v2328 = vrot.slane %v2318, %v2327
    %v2330 = vunpack.c.l.s4 1966171168
    %v2331 = vunpack.c.0.s8 %v2330
    %v2332 = vlaneseq
    %v2333 = vshrl.u32 %v2332, 7
    %v2334 = vsub.s32 %v2331, %v2333
    %v2335 = vrot.slane %v2319, %v2334
    %v2337 = vunpack.c.l.s4 1966171168
    %v2338 = vunpack.c.0.s8 %v2337
    %v2339 = vlaneseq
    %v2340 = vshrl.u32 %v2339, 7
    %v2341 = vsub.s32 %v2338, %v2340
    %v2342 = vrot.slane %v2320, %v2341
    %v2344 = vunpack.c.l.s4 1966171168
    %v2345 = vunpack.c.0.s8 %v2344
    %v2346 = vlaneseq
    %v2347 = vshrl.u32 %v2346, 7
    %v2348 = vsub.s32 %v2345, %v2347
    %v2349 = vrot.slane %v2321, %v2348
    %v2350 = vcombine.low %v2328, %v2335
    %v2351 = vcombine.low %v2342, %v2349
    %v2353 = vunpack.c.l.s4 1966171168
    %v2354 = vunpack.c.0.s8 %v2353
    %v2355 = vlaneseq
    %v2356 = vshrl.u32 %v2355, 7
    %v2357 = vsub.s32 %v2354, %v2356
    %v2358 = vrot.slane %v2350, %v2357
    %v2360 = vunpack.c.l.s4 1966171168
    %v2361 = vunpack.c.0.s8 %v2360
    %v2362 = vlaneseq
    %v2363 = vshrl.u32 %v2362, 7
    %v2364 = vsub.s32 %v2361, %v2363
    %v2365 = vrot.slane %v2351, %v2364
    %v2366 = vcombine.low %v2358, %v2365
    %v2367 = vcombine.low %v1807, %v1811
    %v2368 = vcombine.low %v1815, %v1819
    %v2369 = vcombine.low %v1823, %v1827
    %v2370 = vcombine.low %v1831, %v1835
    %v2372 = vunpack.c.l.s4 1966171168
    %v2373 = vunpack.c.0.s8 %v2372
    %v2374 = vlaneseq
    %v2375 = vshrl.u32 %v2374, 7
    %v2376 = vsub.s32 %v2373, %v2375
    %v2377 = vrot.slane %v2367, %v2376
    %v2379 = vunpack.c.l.s4 1966171168
    %v2380 = vunpack.c.0.s8 %v2379
    %v2381 = vlaneseq
    %v2382 = vshrl.u32 %v2381, 7
    %v2383 = vsub.s32 %v2380, %v2382
    %v2384 = vrot.slane %v2368, %v2383
    %v2386 = vunpack.c.l.s4 1966171168
    %v2387 = vunpack.c.0.s8 %v2386
    %v2388 = vlaneseq
    %v2389 = vshrl.u32 %v2388, 7
    %v2390 = vsub.s32 %v2387, %v2389
    %v2391 = vrot.slane %v2369, %v2390
    %v2393 = vunpack.c.l.s4 1966171168
    %v2394 = vunpack.c.0.s8 %v2393
    %v2395 = vlaneseq
    %v2396 = vshrl.u32 %v2395, 7
    %v2397 = vsub.s32 %v2394, %v2396
    %v2398 = vrot.slane %v2370, %v2397
    %v2399 = vcombine.low %v2377, %v2384
    %v2400 = vcombine.low %v2391, %v2398
    %v2402 = vunpack.c.l.s4 1966171168
    %v2403 = vunpack.c.0.s8 %v2402
    %v2404 = vlaneseq
    %v2405 = vshrl.u32 %v2404, 7
    %v2406 = vsub.s32 %v2403, %v2405
    %v2407 = vrot.slane %v2399, %v2406
    %v2409 = vunpack.c.l.s4 1966171168
    %v2410 = vunpack.c.0.s8 %v2409
    %v2411 = vlaneseq
    %v2412 = vshrl.u32 %v2411, 7
    %v2413 = vsub.s32 %v2410, %v2412
    %v2414 = vrot.slane %v2400, %v2413
    %v2415 = vcombine.low %v2407, %v2414
    %v2416 = vcombine.low %v1839, %v1843
    %v2417 = vcombine.low %v1847, %v1851
    %v2418 = vcombine.low %v1855, %v1859
    %v2419 = vcombine.low %v1863, %v1867
    %v2421 = vunpack.c.l.s4 1966171168
    %v2422 = vunpack.c.0.s8 %v2421
    %v2423 = vlaneseq
    %v2424 = vshrl.u32 %v2423, 7
    %v2425 = vsub.s32 %v2422, %v2424
    %v2426 = vrot.slane %v2416, %v2425
    %v2428 = vunpack.c.l.s4 1966171168
    %v2429 = vunpack.c.0.s8 %v2428
    %v2430 = vlaneseq
    %v2431 = vshrl.u32 %v2430, 7
    %v2432 = vsub.s32 %v2429, %v2431
    %v2433 = vrot.slane %v2417, %v2432
    %v2435 = vunpack.c.l.s4 1966171168
    %v2436 = vunpack.c.0.s8 %v2435
    %v2437 = vlaneseq
    %v2438 = vshrl.u32 %v2437, 7
    %v2439 = vsub.s32 %v2436, %v2438
    %v2440 = vrot.slane %v2418, %v2439
    %v2442 = vunpack.c.l.s4 1966171168
    %v2443 = vunpack.c.0.s8 %v2442
    %v2444 = vlaneseq
    %v2445 = vshrl.u32 %v2444, 7
    %v2446 = vsub.s32 %v2443, %v2445
    %v2447 = vrot.slane %v2419, %v2446
    %v2448 = vcombine.low %v2426, %v2433
    %v2449 = vcombine.low %v2440, %v2447
    %v2451 = vunpack.c.l.s4 1966171168
    %v2452 = vunpack.c.0.s8 %v2451
    %v2453 = vlaneseq
    %v2454 = vshrl.u32 %v2453, 7
    %v2455 = vsub.s32 %v2452, %v2454
    %v2456 = vrot.slane %v2448, %v2455
    %v2458 = vunpack.c.l.s4 1966171168
    %v2459 = vunpack.c.0.s8 %v2458
    %v2460 = vlaneseq
    %v2461 = vshrl.u32 %v2460, 7
    %v2462 = vsub.s32 %v2459, %v2461
    %v2463 = vrot.slane %v2449, %v2462
    %v2464 = vcombine.low %v2456, %v2463
    %v2465 = vcombine.low %v1871, %v1875
    %v2466 = vcombine.low %v1879, %v1883
    %v2467 = vcombine.low %v1887, %v1891
    %v2468 = vcombine.low %v1895, %v1899
    %v2470 = vunpack.c.l.s4 1966171168
    %v2471 = vunpack.c.0.s8 %v2470
    %v2472 = vlaneseq
    %v2473 = vshrl.u32 %v2472, 7
    %v2474 = vsub.s32 %v2471, %v2473
    %v2475 = vrot.slane %v2465, %v2474
    %v2477 = vunpack.c.l.s4 1966171168
    %v2478 = vunpack.c.0.s8 %v2477
    %v2479 = vlaneseq
    %v2480 = vshrl.u32 %v2479, 7
    %v2481 = vsub.s32 %v2478, %v2480
    %v2482 = vrot.slane %v2466, %v2481
    %v2484 = vunpack.c.l.s4 1966171168
    %v2485 = vunpack.c.0.s8 %v2484
    %v2486 = vlaneseq
    %v2487 = vshrl.u32 %v2486, 7
    %v2488 = vsub.s32 %v2485, %v2487
    %v2489 = vrot.slane %v2467, %v2488
    %v2491 = vunpack.c.l.s4 1966171168
    %v2492 = vunpack.c.0.s8 %v2491
    %v2493 = vlaneseq
    %v2494 = vshrl.u32 %v2493, 7
    %v2495 = vsub.s32 %v2492, %v2494
    %v2496 = vrot.slane %v2468, %v2495
    %v2497 = vcombine.low %v2475, %v2482
    %v2498 = vcombine.low %v2489, %v2496
    %v2500 = vunpack.c.l.s4 1966171168
    %v2501 = vunpack.c.0.s8 %v2500
    %v2502 = vlaneseq
    %v2503 = vshrl.u32 %v2502, 7
    %v2504 = vsub.s32 %v2501, %v2503
    %v2505 = vrot.slane %v2497, %v2504
    %v2507 = vunpack.c.l.s4 1966171168
    %v2508 = vunpack.c.0.s8 %v2507
    %v2509 = vlaneseq
    %v2510 = vshrl.u32 %v2509, 7
    %v2511 = vsub.s32 %v2508, %v2510
    %v2512 = vrot.slane %v2498, %v2511
    %v2513 = vcombine.low %v2505, %v2512
    %v2514 = vcombine.low %v1903, %v1907
    %v2515 = vcombine.low %v1911, %v1915
    %v2516 = vcombine.low %v1919, %v1923
    %v2517 = vcombine.low %v1927, %v1931
    %v2519 = vunpack.c.l.s4 1966171168
    %v2520 = vunpack.c.0.s8 %v2519
    %v2521 = vlaneseq
    %v2522 = vshrl.u32 %v2521, 7
    %v2523 = vsub.s32 %v2520, %v2522
    %v2524 = vrot.slane %v2514, %v2523
    %v2526 = vunpack.c.l.s4 1966171168
    %v2527 = vunpack.c.0.s8 %v2526
    %v2528 = vlaneseq
    %v2529 = vshrl.u32 %v2528, 7
    %v2530 = vsub.s32 %v2527, %v2529
    %v2531 = vrot.slane %v2515, %v2530
    %v2533 = vunpack.c.l.s4 1966171168
    %v2534 = vunpack.c.0.s8 %v2533
    %v2535 = vlaneseq
    %v2536 = vshrl.u32 %v2535, 7
    %v2537 = vsub.s32 %v2534, %v2536
    %v2538 = vrot.slane %v2516, %v2537
    %v2540 = vunpack.c.l.s4 1966171168
    %v2541 = vunpack.c.0.s8 %v2540
    %v2542 = vlaneseq
    %v2543 = vshrl.u32 %v2542, 7
    %v2544 = vsub.s32 %v2541, %v2543
    %v2545 = vrot.slane %v2517, %v2544
    %v2546 = vcombine.low %v2524, %v2531
    %v2547 = vcombine.low %v2538, %v2545
    %v2549 = vunpack.c.l.s4 1966171168
    %v2550 = vunpack.c.0.s8 %v2549
    %v2551 = vlaneseq
    %v2552 = vshrl.u32 %v2551, 7
    %v2553 = vsub.s32 %v2550, %v2552
    %v2554 = vrot.slane %v2546, %v2553
    %v2556 = vunpack.c.l.s4 1966171168
    %v2557 = vunpack.c.0.s8 %v2556
    %v2558 = vlaneseq
    %v2559 = vshrl.u32 %v2558, 7
    %v2560 = vsub.s32 %v2557, %v2559
    %v2561 = vrot.slane %v2547, %v2560
    %v2562 = vcombine.low %v2554, %v2561
    %v2563 = vcombine.low %v1935, %v1939
    %v2564 = vcombine.low %v1943, %v1947
    %v2565 = vcombine.low %v1951, %v1955
    %v2566 = vcombine.low %v1959, %v1963
    %v2568 = vunpack.c.l.s4 1966171168
    %v2569 = vunpack.c.0.s8 %v2568
    %v2570 = vlaneseq
    %v2571 = vshrl.u32 %v2570, 7
    %v2572 = vsub.s32 %v2569, %v2571
    %v2573 = vrot.slane %v2563, %v2572
    %v2575 = vunpack.c.l.s4 1966171168
    %v2576 = vunpack.c.0.s8 %v2575
    %v2577 = vlaneseq
    %v2578 = vshrl.u32 %v2577, 7
    %v2579 = vsub.s32 %v2576, %v2578
    %v2580 = vrot.slane %v2564, %v2579
    %v2582 = vunpack.c.l.s4 1966171168
    %v2583 = vunpack.c.0.s8 %v2582
    %v2584 = vlaneseq
    %v2585 = vshrl.u32 %v2584, 7
    %v2586 = vsub.s32 %v2583, %v2585
    %v2587 = vrot.slane %v2565, %v2586
    %v2589 = vunpack.c.l.s4 1966171168
    %v2590 = vunpack.c.0.s8 %v2589
    %v2591 = vlaneseq
    %v2592 = vshrl.u32 %v2591, 7
    %v2593 = vsub.s32 %v2590, %v2592
    %v2594 = vrot.slane %v2566, %v2593
    %v2595 = vcombine.low %v2573, %v2580
    %v2596 = vcombine.low %v2587, %v2594
    %v2598 = vunpack.c.l.s4 1966171168
    %v2599 = vunpack.c.0.s8 %v2598
    %v2600 = vlaneseq
    %v2601 = vshrl.u32 %v2600, 7
    %v2602 = vsub.s32 %v2599, %v2601
    %v2603 = vrot.slane %v2595, %v2602
    %v2605 = vunpack.c.l.s4 1966171168
    %v2606 = vunpack.c.0.s8 %v2605
    %v2607 = vlaneseq
    %v2608 = vshrl.u32 %v2607, 7
    %v2609 = vsub.s32 %v2606, %v2608
    %v2610 = vrot.slane %v2596, %v2609
    %v2611 = vcombine.low %v2603, %v2610
    %v2612 = vcombine.low %v1967, %v1971
    %v2613 = vcombine.low %v1975, %v1979
    %v2614 = vcombine.low %v1983, %v1987
    %v2615 = vcombine.low %v1991, %v1995
    %v2617 = vunpack.c.l.s4 1966171168
    %v2618 = vunpack.c.0.s8 %v2617
    %v2619 = vlaneseq
    %v2620 = vshrl.u32 %v2619, 7
    %v2621 = vsub.s32 %v2618, %v2620
    %v2622 = vrot.slane %v2612, %v2621
    %v2624 = vunpack.c.l.s4 1966171168
    %v2625 = vunpack.c.0.s8 %v2624
    %v2626 = vlaneseq
    %v2627 = vshrl.u32 %v2626, 7
    %v2628 = vsub.s32 %v2625, %v2627
    %v2629 = vrot.slane %v2613, %v2628
    %v2631 = vunpack.c.l.s4 1966171168
    %v2632 = vunpack.c.0.s8 %v2631
    %v2633 = vlaneseq
    %v2634 = vshrl.u32 %v2633, 7
    %v2635 = vsub.s32 %v2632, %v2634
    %v2636 = vrot.slane %v2614, %v2635
    %v2638 = vunpack.c.l.s4 1966171168
    %v2639 = vunpack.c.0.s8 %v2638
    %v2640 = vlaneseq
    %v2641 = vshrl.u32 %v2640, 7
    %v2642 = vsub.s32 %v2639, %v2641
    %v2643 = vrot.slane %v2615, %v2642
    %v2644 = vcombine.low %v2622, %v2629
    %v2645 = vcombine.low %v2636, %v2643
    %v2647 = vunpack.c.l.s4 1966171168
    %v2648 = vunpack.c.0.s8 %v2647
    %v2649 = vlaneseq
    %v2650 = vshrl.u32 %v2649, 7
    %v2651 = vsub.s32 %v2648, %v2650
    %v2652 = vrot.slane %v2644, %v2651
    %v2654 = vunpack.c.l.s4 1966171168
    %v2655 = vunpack.c.0.s8 %v2654
    %v2656 = vlaneseq
    %v2657 = vshrl.u32 %v2656, 7
    %v2658 = vsub.s32 %v2655, %v2657
    %v2659 = vrot.slane %v2645, %v2658
    %v2660 = vcombine.low %v2652, %v2659
    %v2661 = vcombine.low %v1999, %v2003
    %v2662 = vcombine.low %v2007, %v2011
    %v2663 = vcombine.low %v2015, %v2019
    %v2664 = vcombine.low %v2023, %v2027
    %v2666 = vunpack.c.l.s4 1966171168
    %v2667 = vunpack.c.0.s8 %v2666
    %v2668 = vlaneseq
    %v2669 = vshrl.u32 %v2668, 7
    %v2670 = vsub.s32 %v2667, %v2669
    %v2671 = vrot.slane %v2661, %v2670
    %v2673 = vunpack.c.l.s4 1966171168
    %v2674 = vunpack.c.0.s8 %v2673
    %v2675 = vlaneseq
    %v2676 = vshrl.u32 %v2675, 7
    %v2677 = vsub.s32 %v2674, %v2676
    %v2678 = vrot.slane %v2662, %v2677
    %v2680 = vunpack.c.l.s4 1966171168
    %v2681 = vunpack.c.0.s8 %v2680
    %v2682 = vlaneseq
    %v2683 = vshrl.u32 %v2682, 7
    %v2684 = vsub.s32 %v2681, %v2683
    %v2685 = vrot.slane %v2663, %v2684
    %v2687 = vunpack.c.l.s4 1966171168
    %v2688 = vunpack.c.0.s8 %v2687
    %v2689 = vlaneseq
    %v2690 = vshrl.u32 %v2689, 7
    %v2691 = vsub.s32 %v2688, %v2690
    %v2692 = vrot.slane %v2664, %v2691
    %v2693 = vcombine.low %v2671, %v2678
    %v2694 = vcombine.low %v2685, %v2692
    %v2696 = vunpack.c.l.s4 1966171168
    %v2697 = vunpack.c.0.s8 %v2696
    %v2698 = vlaneseq
    %v2699 = vshrl.u32 %v2698, 7
    %v2700 = vsub.s32 %v2697, %v2699
    %v2701 = vrot.slane %v2693, %v2700
    %v2703 = vunpack.c.l.s4 1966171168
    %v2704 = vunpack.c.0.s8 %v2703
    %v2705 = vlaneseq
    %v2706 = vshrl.u32 %v2705, 7
    %v2707 = vsub.s32 %v2704, %v2706
    %v2708 = vrot.slane %v2694, %v2707
    %v2709 = vcombine.low %v2701, %v2708
    %v2710 = vcombine.low %v2031, %v2035
    %v2711 = vcombine.low %v2039, %v2043
    %v2712 = vcombine.low %v2047, %v2051
    %v2713 = vcombine.low %v2055, %v2059
    %v2715 = vunpack.c.l.s4 1966171168
    %v2716 = vunpack.c.0.s8 %v2715
    %v2717 = vlaneseq
    %v2718 = vshrl.u32 %v2717, 7
    %v2719 = vsub.s32 %v2716, %v2718
    %v2720 = vrot.slane %v2710, %v2719
    %v2722 = vunpack.c.l.s4 1966171168
    %v2723 = vunpack.c.0.s8 %v2722
    %v2724 = vlaneseq
    %v2725 = vshrl.u32 %v2724, 7
    %v2726 = vsub.s32 %v2723, %v2725
    %v2727 = vrot.slane %v2711, %v2726
    %v2729 = vunpack.c.l.s4 1966171168
    %v2730 = vunpack.c.0.s8 %v2729
    %v2731 = vlaneseq
    %v2732 = vshrl.u32 %v2731, 7
    %v2733 = vsub.s32 %v2730, %v2732
    %v2734 = vrot.slane %v2712, %v2733
    %v2736 = vunpack.c.l.s4 1966171168
    %v2737 = vunpack.c.0.s8 %v2736
    %v2738 = vlaneseq
    %v2739 = vshrl.u32 %v2738, 7
    %v2740 = vsub.s32 %v2737, %v2739
    %v2741 = vrot.slane %v2713, %v2740
    %v2742 = vcombine.low %v2720, %v2727
    %v2743 = vcombine.low %v2734, %v2741
    %v2745 = vunpack.c.l.s4 1966171168
    %v2746 = vunpack.c.0.s8 %v2745
    %v2747 = vlaneseq
    %v2748 = vshrl.u32 %v2747, 7
    %v2749 = vsub.s32 %v2746, %v2748
    %v2750 = vrot.slane %v2742, %v2749
    %v2752 = vunpack.c.l.s4 1966171168
    %v2753 = vunpack.c.0.s8 %v2752
    %v2754 = vlaneseq
    %v2755 = vshrl.u32 %v2754, 7
    %v2756 = vsub.s32 %v2753, %v2755
    %v2757 = vrot.slane %v2743, %v2756
    %v2758 = vcombine.low %v2750, %v2757
    %v2759 = vcombine.low %v2063, %v2067
    %v2760 = vcombine.low %v2071, %v2075
    %v2761 = vcombine.low %v2079, %v2083
    %v2762 = vcombine.low %v2087, %v2091
    %v2764 = vunpack.c.l.s4 1966171168
    %v2765 = vunpack.c.0.s8 %v2764
    %v2766 = vlaneseq
    %v2767 = vshrl.u32 %v2766, 7
    %v2768 = vsub.s32 %v2765, %v2767
    %v2769 = vrot.slane %v2759, %v2768
    %v2771 = vunpack.c.l.s4 1966171168
    %v2772 = vunpack.c.0.s8 %v2771
    %v2773 = vlaneseq
    %v2774 = vshrl.u32 %v2773, 7
    %v2775 = vsub.s32 %v2772, %v2774
    %v2776 = vrot.slane %v2760, %v2775
    %v2778 = vunpack.c.l.s4 1966171168
    %v2779 = vunpack.c.0.s8 %v2778
    %v2780 = vlaneseq
    %v2781 = vshrl.u32 %v2780, 7
    %v2782 = vsub.s32 %v2779, %v2781
    %v2783 = vrot.slane %v2761, %v2782
    %v2785 = vunpack.c.l.s4 1966171168
    %v2786 = vunpack.c.0.s8 %v2785
    %v2787 = vlaneseq
    %v2788 = vshrl.u32 %v2787, 7
    %v2789 = vsub.s32 %v2786, %v2788
    %v2790 = vrot.slane %v2762, %v2789
    %v2791 = vcombine.low %v2769, %v2776
    %v2792 = vcombine.low %v2783, %v2790
    %v2794 = vunpack.c.l.s4 1966171168
    %v2795 = vunpack.c.0.s8 %v2794
    %v2796 = vlaneseq
    %v2797 = vshrl.u32 %v2796, 7
    %v2798 = vsub.s32 %v2795, %v2797
    %v2799 = vrot.slane %v2791, %v2798
    %v2801 = vunpack.c.l.s4 1966171168
    %v2802 = vunpack.c.0.s8 %v2801
    %v2803 = vlaneseq
    %v2804 = vshrl.u32 %v2803, 7
    %v2805 = vsub.s32 %v2802, %v2804
    %v2806 = vrot.slane %v2792, %v2805
    %v2807 = vcombine.low %v2799, %v2806
    %v2808 = vcombine.low %v2095, %v2099
    %v2809 = vcombine.low %v2103, %v2107
    %v2810 = vcombine.low %v2111, %v2115
    %v2811 = vcombine.low %v2119, %v2123
    %v2813 = vunpack.c.l.s4 1966171168
    %v2814 = vunpack.c.0.s8 %v2813
    %v2815 = vlaneseq
    %v2816 = vshrl.u32 %v2815, 7
    %v2817 = vsub.s32 %v2814, %v2816
    %v2818 = vrot.slane %v2808, %v2817
    %v2820 = vunpack.c.l.s4 1966171168
    %v2821 = vunpack.c.0.s8 %v2820
    %v2822 = vlaneseq
    %v2823 = vshrl.u32 %v2822, 7
    %v2824 = vsub.s32 %v2821, %v2823
    %v2825 = vrot.slane %v2809, %v2824
    %v2827 = vunpack.c.l.s4 1966171168
    %v2828 = vunpack.c.0.s8 %v2827
    %v2829 = vlaneseq
    %v2830 = vshrl.u32 %v2829, 7
    %v2831 = vsub.s32 %v2828, %v2830
    %v2832 = vrot.slane %v2810, %v2831
    %v2834 = vunpack.c.l.s4 1966171168
    %v2835 = vunpack.c.0.s8 %v2834
    %v2836 = vlaneseq
    %v2837 = vshrl.u32 %v2836, 7
    %v2838 = vsub.s32 %v2835, %v2837
    %v2839 = vrot.slane %v2811, %v2838
    %v2840 = vcombine.low %v2818, %v2825
    %v2841 = vcombine.low %v2832, %v2839
    %v2843 = vunpack.c.l.s4 1966171168
    %v2844 = vunpack.c.0.s8 %v2843
    %v2845 = vlaneseq
    %v2846 = vshrl.u32 %v2845, 7
    %v2847 = vsub.s32 %v2844, %v2846
    %v2848 = vrot.slane %v2840, %v2847
    %v2850 = vunpack.c.l.s4 1966171168
    %v2851 = vunpack.c.0.s8 %v2850
    %v2852 = vlaneseq
    %v2853 = vshrl.u32 %v2852, 7
    %v2854 = vsub.s32 %v2851, %v2853
    %v2855 = vrot.slane %v2841, %v2854
    %v2856 = vcombine.low %v2848, %v2855
    %v2857 = vcombine.low %v2127, %v2131
    %v2858 = vcombine.low %v2135, %v2139
    %v2859 = vcombine.low %v2143, %v2147
    %v2860 = vcombine.low %v2151, %v2155
    %v2862 = vunpack.c.l.s4 1966171168
    %v2863 = vunpack.c.0.s8 %v2862
    %v2864 = vlaneseq
    %v2865 = vshrl.u32 %v2864, 7
    %v2866 = vsub.s32 %v2863, %v2865
    %v2867 = vrot.slane %v2857, %v2866
    %v2869 = vunpack.c.l.s4 1966171168
    %v2870 = vunpack.c.0.s8 %v2869
    %v2871 = vlaneseq
    %v2872 = vshrl.u32 %v2871, 7
    %v2873 = vsub.s32 %v2870, %v2872
    %v2874 = vrot.slane %v2858, %v2873
    %v2876 = vunpack.c.l.s4 1966171168
    %v2877 = vunpack.c.0.s8 %v2876
    %v2878 = vlaneseq
    %v2879 = vshrl.u32 %v2878, 7
    %v2880 = vsub.s32 %v2877, %v2879
    %v2881 = vrot.slane %v2859, %v2880
    %v2883 = vunpack.c.l.s4 1966171168
    %v2884 = vunpack.c.0.s8 %v2883
    %v2885 = vlaneseq
    %v2886 = vshrl.u32 %v2885, 7
    %v2887 = vsub.s32 %v2884, %v2886
    %v2888 = vrot.slane %v2860, %v2887
    %v2889 = vcombine.low %v2867, %v2874
    %v2890 = vcombine.low %v2881, %v2888
    %v2892 = vunpack.c.l.s4 1966171168
    %v2893 = vunpack.c.0.s8 %v2892
    %v2894 = vlaneseq
    %v2895 = vshrl.u32 %v2894, 7
    %v2896 = vsub.s32 %v2893, %v2895
    %v2897 = vrot.slane %v2889, %v2896
    %v2899 = vunpack.c.l.s4 1966171168
    %v2900 = vunpack.c.0.s8 %v2899
    %v2901 = vlaneseq
    %v2902 = vshrl.u32 %v2901, 7
    %v2903 = vsub.s32 %v2900, %v2902
    %v2904 = vrot.slane %v2890, %v2903
    %v2905 = vcombine.low %v2897, %v2904
    %v2906 = vcombine.low %v2159, %v2163
    %v2907 = vcombine.low %v2167, %v2171
    %v2908 = vcombine.low %v2175, %v2179
    %v2909 = vcombine.low %v2183, %v2187
    %v2911 = vunpack.c.l.s4 1966171168
    %v2912 = vunpack.c.0.s8 %v2911
    %v2913 = vlaneseq
    %v2914 = vshrl.u32 %v2913, 7
    %v2915 = vsub.s32 %v2912, %v2914
    %v2916 = vrot.slane %v2906, %v2915
    %v2918 = vunpack.c.l.s4 1966171168
    %v2919 = vunpack.c.0.s8 %v2918
    %v2920 = vlaneseq
    %v2921 = vshrl.u32 %v2920, 7
    %v2922 = vsub.s32 %v2919, %v2921
    %v2923 = vrot.slane %v2907, %v2922
    %v2925 = vunpack.c.l.s4 1966171168
    %v2926 = vunpack.c.0.s8 %v2925
    %v2927 = vlaneseq
    %v2928 = vshrl.u32 %v2927, 7
    %v2929 = vsub.s32 %v2926, %v2928
    %v2930 = vrot.slane %v2908, %v2929
    %v2932 = vunpack.c.l.s4 1966171168
    %v2933 = vunpack.c.0.s8 %v2932
    %v2934 = vlaneseq
    %v2935 = vshrl.u32 %v2934, 7
    %v2936 = vsub.s32 %v2933, %v2935
    %v2937 = vrot.slane %v2909, %v2936
    %v2938 = vcombine.low %v2916, %v2923
    %v2939 = vcombine.low %v2930, %v2937
    %v2941 = vunpack.c.l.s4 1966171168
    %v2942 = vunpack.c.0.s8 %v2941
    %v2943 = vlaneseq
    %v2944 = vshrl.u32 %v2943, 7
    %v2945 = vsub.s32 %v2942, %v2944
    %v2946 = vrot.slane %v2938, %v2945
    %v2948 = vunpack.c.l.s4 1966171168
    %v2949 = vunpack.c.0.s8 %v2948
    %v2950 = vlaneseq
    %v2951 = vshrl.u32 %v2950, 7
    %v2952 = vsub.s32 %v2949, %v2951
    %v2953 = vrot.slane %v2939, %v2952
    %v2954 = vcombine.low %v2946, %v2953
    %v2955 = vcombine.low %v2191, %v2195
    %v2956 = vcombine.low %v2199, %v2203
    %v2957 = vcombine.low %v2207, %v2211
    %v2958 = vcombine.low %v2215, %v2219
    %v2960 = vunpack.c.l.s4 1966171168
    %v2961 = vunpack.c.0.s8 %v2960
    %v2962 = vlaneseq
    %v2963 = vshrl.u32 %v2962, 7
    %v2964 = vsub.s32 %v2961, %v2963
    %v2965 = vrot.slane %v2955, %v2964
    %v2967 = vunpack.c.l.s4 1966171168
    %v2968 = vunpack.c.0.s8 %v2967
    %v2969 = vlaneseq
    %v2970 = vshrl.u32 %v2969, 7
    %v2971 = vsub.s32 %v2968, %v2970
    %v2972 = vrot.slane %v2956, %v2971
    %v2974 = vunpack.c.l.s4 1966171168
    %v2975 = vunpack.c.0.s8 %v2974
    %v2976 = vlaneseq
    %v2977 = vshrl.u32 %v2976, 7
    %v2978 = vsub.s32 %v2975, %v2977
    %v2979 = vrot.slane %v2957, %v2978
    %v2981 = vunpack.c.l.s4 1966171168
    %v2982 = vunpack.c.0.s8 %v2981
    %v2983 = vlaneseq
    %v2984 = vshrl.u32 %v2983, 7
    %v2985 = vsub.s32 %v2982, %v2984
    %v2986 = vrot.slane %v2958, %v2985
    %v2987 = vcombine.low %v2965, %v2972
    %v2988 = vcombine.low %v2979, %v2986
    %v2990 = vunpack.c.l.s4 1966171168
    %v2991 = vunpack.c.0.s8 %v2990
    %v2992 = vlaneseq
    %v2993 = vshrl.u32 %v2992, 7
    %v2994 = vsub.s32 %v2991, %v2993
    %v2995 = vrot.slane %v2987, %v2994
    %v2997 = vunpack.c.l.s4 1966171168
    %v2998 = vunpack.c.0.s8 %v2997
    %v2999 = vlaneseq
    %v3000 = vshrl.u32 %v2999, 7
    %v3001 = vsub.s32 %v2998, %v3000
    %v3002 = vrot.slane %v2988, %v3001
    %v3003 = vcombine.low %v2995, %v3002
    %3004 = vset.pattern.permute.xlu0 0
    %3005 = vperm.xlu0 %3004, %v2268
    %v3006 = vpop.permute.xlu0 %3005
    %3007 = vset.pattern.permute.xlu0 0
    %3008 = vperm.xlu0 %3007, %v2317
    %v3009 = vpop.permute.xlu0 %3008
    %3010 = vset.pattern.permute.xlu0 0
    %3011 = vperm.xlu0 %3010, %v2366
    %v3012 = vpop.permute.xlu0 %3011
    %3013 = vset.pattern.permute.xlu0 0
    %3014 = vperm.xlu0 %3013, %v2415
    %v3015 = vpop.permute.xlu0 %3014
    %3016 = vset.pattern.permute.xlu0 0
    %3017 = vperm.xlu0 %3016, %v2464
    %v3018 = vpop.permute.xlu0 %3017
    %3019 = vset.pattern.permute.xlu0 0
    %3020 = vperm.xlu0 %3019, %v2513
    %v3021 = vpop.permute.xlu0 %3020
    %3022 = vset.pattern.permute.xlu0 0
    %3023 = vperm.xlu0 %3022, %v2562
    %v3024 = vpop.permute.xlu0 %3023
    %3025 = vset.pattern.permute.xlu0 0
    %3026 = vperm.xlu0 %3025, %v2611
    %v3027 = vpop.permute.xlu0 %3026
    %3028 = vset.pattern.permute.xlu0 0
    %3029 = vperm.xlu0 %3028, %v2660
    %v3030 = vpop.permute.xlu0 %3029
    %3031 = vset.pattern.permute.xlu0 0
    %3032 = vperm.xlu0 %3031, %v2709
    %v3033 = vpop.permute.xlu0 %3032
    %3034 = vset.pattern.permute.xlu0 0
    %3035 = vperm.xlu0 %3034, %v2758
    %v3036 = vpop.permute.xlu0 %3035
    %3037 = vset.pattern.permute.xlu0 0
    %3038 = vperm.xlu0 %3037, %v2807
    %v3039 = vpop.permute.xlu0 %3038
    %3040 = vset.pattern.permute.xlu0 0
    %3041 = vperm.xlu0 %3040, %v2856
    %v3042 = vpop.permute.xlu0 %3041
    %3043 = vset.pattern.permute.xlu0 0
    %3044 = vperm.xlu0 %3043, %v2905
    %v3045 = vpop.permute.xlu0 %3044
    %3046 = vset.pattern.permute.xlu0 0
    %3047 = vperm.xlu0 %3046, %v2954
    %v3048 = vpop.permute.xlu0 %3047
    %3049 = vset.pattern.permute.xlu0 0
    %3050 = vperm.xlu0 %3049, %v3003
    %v3051 = vpop.permute.xlu0 %3050
    %v3052 = vlaneseq
    %v3053 = vshrl.u32 %v3052, 7
    %v3054 = vsub.s32 %v1564, %v3053
    %v3055 = vrot.slane %v3006, %v3054
    %v3056 = vlaneseq
    %v3057 = vshrl.u32 %v3056, 7
    %v3058 = vsub.s32 %v1569, %v3057
    %v3059 = vrot.slane %v3009, %v3058
    %v3060 = vsel %vm1574, %v3059, %v3055
    %v3061 = vlaneseq
    %v3062 = vshrl.u32 %v3061, 7
    %v3063 = vsub.s32 %v1576, %v3062
    %v3064 = vrot.slane %v3012, %v3063
    %v3065 = vsel %vm1581, %v3064, %v3060
    %v3066 = vlaneseq
    %v3067 = vshrl.u32 %v3066, 7
    %v3068 = vsub.s32 %v1583, %v3067
    %v3069 = vrot.slane %v3015, %v3068
    %v3070 = vsel %vm1588, %v3069, %v3065
    %v3071 = vlaneseq
    %v3072 = vshrl.u32 %v3071, 7
    %v3073 = vsub.s32 %v1590, %v3072
    %v3074 = vrot.slane %v3018, %v3073
    %v3075 = vsel %vm1595, %v3074, %v3070
    %v3076 = vlaneseq
    %v3077 = vshrl.u32 %v3076, 7
    %v3078 = vsub.s32 %v1597, %v3077
    %v3079 = vrot.slane %v3021, %v3078
    %v3080 = vsel %vm1602, %v3079, %v3075
    %v3081 = vlaneseq
    %v3082 = vshrl.u32 %v3081, 7
    %v3083 = vsub.s32 %v1604, %v3082
    %v3084 = vrot.slane %v3024, %v3083
    %v3085 = vsel %vm1609, %v3084, %v3080
    %v3086 = vlaneseq
    %v3087 = vshrl.u32 %v3086, 7
    %v3088 = vsub.s32 %v1611, %v3087
    %v3089 = vrot.slane %v3027, %v3088
    %v3090 = vsel %vm1616, %v3089, %v3085
    %v3091 = vlaneseq
    %v3092 = vshrl.u32 %v3091, 7
    %v3093 = vsub.s32 %v1618, %v3092
    %v3094 = vrot.slane %v3030, %v3093
    %v3095 = vsel %vm1623, %v3094, %v3090
    %v3096 = vlaneseq
    %v3097 = vshrl.u32 %v3096, 7
    %v3098 = vsub.s32 %v1625, %v3097
    %v3099 = vrot.slane %v3033, %v3098
    %v3100 = vsel %vm1630, %v3099, %v3095
    %v3101 = vlaneseq
    %v3102 = vshrl.u32 %v3101, 7
    %v3103 = vsub.s32 %v1632, %v3102
    %v3104 = vrot.slane %v3036, %v3103
    %v3105 = vsel %vm1637, %v3104, %v3100
    %v3106 = vlaneseq
    %v3107 = vshrl.u32 %v3106, 7
    %v3108 = vsub.s32 %v1639, %v3107
    %v3109 = vrot.slane %v3039, %v3108
    %v3110 = vsel %vm1644, %v3109, %v3105
    %v3111 = vlaneseq
    %v3112 = vshrl.u32 %v3111, 7
    %v3113 = vsub.s32 %v1646, %v3112
    %v3114 = vrot.slane %v3042, %v3113
    %v3115 = vsel %vm1651, %v3114, %v3110
    %v3116 = vlaneseq
    %v3117 = vshrl.u32 %v3116, 7
    %v3118 = vsub.s32 %v1653, %v3117
    %v3119 = vrot.slane %v3045, %v3118
    %v3120 = vsel %vm1658, %v3119, %v3115
    %v3121 = vlaneseq
    %v3122 = vshrl.u32 %v3121, 7
    %v3123 = vsub.s32 %v1660, %v3122
    %v3124 = vrot.slane %v3048, %v3123
    %v3125 = vsel %vm1665, %v3124, %v3120
    %v3126 = vlaneseq
    %v3127 = vshrl.u32 %v3126, 7
    %v3128 = vsub.s32 %v1667, %v3127
    %v3129 = vrot.slane %v3051, %v3128
    %v3130 = vsel %vm1672, %v3129, %v3125
    %v3132 = vunpack.c.l.s4 1966171168
    %v3133 = vunpack.c.0.s8 %v3132
    %v3134 = vlaneseq
    %v3135 = vshrl.u32 %v3134, 7
    %v3136 = vsub.s32 %v3133, %v3135
    %v3137 = vrot.slane %v3130, %v3136
    %v3139 = vunpack.c.l.s4 1966171168
    %v3140 = vunpack.c.0.s8 %v3139
    %v3141 = vlaneseq
    %v3142 = vshrl.u32 %v3141, 7
    %v3143 = vsub.s32 %v3140, %v3142
    %v3144 = vrot.slane %v3137, %v3143
    %v3146 = vadd.f32 %v1691, %v3144
    %3147 = vst [vmem:[#allocation3] sm:$0x1] %v3146
    // Predicated region
    $region22: #{tpu_custom_call.1} parent=1 // pred_check
      %p3148 = pneg %p21
    $region23: #{tpu_custom_call.1} parent=1 // pred_check_branch
      %3150 = sbr.rel (%p3148) target = $region25
    $region24: #{tpu_custom_call.1} parent=1 // pred_region
      %v3151 = vld [vmem:[#allocation2] sm:$0x1]
      %3152 = vst [vmem:[#allocation4] sm:$0x1] %v3151
      %v3153 = vld [vmem:[#allocation3] sm:$0x1]
      %3154 = vst [vmem:[#allocation6] sm:$0x1] %v3153
    $region25: #{tpu_custom_call.1} parent=1 // pred_fallthru
      _
    // Predicated region
    $region26: #{tpu_custom_call.1} parent=1 // pred_check
      _
    $region27: #{tpu_custom_call.1} parent=1 // pred_check_branch
      %3156 = sbr.rel (0) target = $region29
    $region28: #{tpu_custom_call.1} parent=1 // pred_region
      %s3158 = ssub.s32 16, 16
      %3159 = vsyncadd [#allocation5], %s3158
      %s3161 = sshll.u32 [#allocation4], 4
      %s3162 = int_to_ptr.vmem [resolvable:$true] %s3161
      %3164 = dma.vmem_to_hbm [thread:$0]  %s3162, 16, %s4, [#allocation5]
    $region29: #{tpu_custom_call.1} parent=1 // pred_fallthru
      _
    // Predicated region
    $region30: #{tpu_custom_call.1} parent=1 // pred_check
      _
    $region31: #{tpu_custom_call.1} parent=1 // pred_check_branch
      %3166 = sbr.rel (0) target = $region33
    $region32: #{tpu_custom_call.1} parent=1 // pred_region
      %s3168 = ssub.s32 16, 16
      %3169 = vsyncadd [#allocation7], %s3168
      %s3171 = sshll.u32 [#allocation6], 4
      %s3172 = int_to_ptr.vmem [resolvable:$true] %s3171
      %3174 = dma.vmem_to_hbm [thread:$0]  %s3172, 16, %s5, [#allocation7]
    $region33: #{tpu_custom_call.1} parent=1 // pred_fallthru
      _
    // Predicated region
    $region34: #{tpu_custom_call.1} parent=1 // pred_check
      _
    $region35: #{tpu_custom_call.1} parent=1 // pred_check_branch
      %3176 = sbr.rel (0) target = $region37
    $region36: #{tpu_custom_call.1} parent=1 // pred_region
      %3177 = dma.done [#allocation5], 16
    $region37: #{tpu_custom_call.1} parent=1 // pred_fallthru
      _
    // Predicated region
    $region38: #{tpu_custom_call.1} parent=1 // pred_check
      _
    $region39: #{tpu_custom_call.1} parent=1 // pred_check_branch
      %3179 = sbr.rel (0) target = $region41
    $region40: #{tpu_custom_call.1} parent=1 // pred_region
      %3180 = dma.done [#allocation7], 16
    $region41: #{tpu_custom_call.1} parent=1 // pred_fallthru
      _
    %3181 = vsyncpa [#allocation5], 1
    %3182 = vsyncpa [#allocation7], 1

</llo_original>
